<compile_context>
chip_gen: v7x
topology: tpu7x:2x2x1
jax: 0.10.0
libtpu: 0.0.40
codegen_flags: <defaults>
</compile_context>

<pallas_src>
import jax
import jax.numpy as jnp
from jax.experimental import pallas as pl
from jax.experimental.pallas import tpu as pltpu


def _rescal_edge_kernel(h_ref, r_ref, t_ref, score_ref):
    """Scores a tile of TE edges.

    h_ref     : (TE, 1, R)  head embeddings (one row per edge)
    r_ref     : (TE, R, C)  per-edge relation matrices (big streaming operand)
    t_ref     : (TE, 1, C)  tail embeddings
    score_ref : (TE, 1, 1)  per-edge scores
    """
    h = h_ref[...].astype(jnp.float32)
    r = r_ref[...].astype(jnp.float32)
    t = t_ref[...].astype(jnp.float32)

    # hR[e, 0, j] = sum_i h[e, 0, i] * R[e, i, j]   (batched MXU matmul)
    hR = jnp.einsum("bxr,brc->bxc", h, r, preferred_element_type=jnp.float32)
    # score[e] = sum_j hR[e, 0, j] * t[e, 0, j]     (single fused lane reduce)
    s = jnp.sum(hR * t, axis=-1, keepdims=True)     # (TE, 1, 1)
    score_ref[...] = s.astype(score_ref.dtype)


def _pick_tile_e(E, relation_dim, entity_dim, itemsize,
                 r_block_budget_bytes=4 * 1024 * 1024):
    """Largest edge tile whose relation block fits the per-buffer VMEM budget."""
    per_edge_bytes = relation_dim * entity_dim * itemsize
    tile = max(1, r_block_budget_bytes // per_edge_bytes)
    tile = int(min(tile, 1024, E))
    if E >= 16:
        # keep at least 2 grid steps so v7x's two TensorCores both get work
        tile = min(tile, max(8, (pl.cdiv(E, 2) // 8) * 8))
    if tile >= 8:
        tile = (tile // 8) * 8
    return max(tile, 1)


def rescal_score(head_emb, rel_emb, tail_emb, relation_dim, entity_dim, *,
                 tile_e=None):
    """Per-edge RESCAL score.  head:(E,R), rel:(E,R*C), tail:(E,C) -> (E,)."""
    E, hdim = head_emb.shape
    assert hdim == relation_dim, "head dim must equal relation_dim"
    assert tail_emb.shape == (E, entity_dim)
    assert rel_emb.shape == (E, relation_dim * entity_dim)

    out_dtype = head_emb.dtype
    itemsize = jnp.dtype(head_emb.dtype).itemsize
    if tile_e is None:
        tile_e = _pick_tile_e(E, relation_dim, entity_dim, itemsize)

    grid_e = pl.cdiv(E, tile_e)
    e_pad = grid_e * tile_e

    # Wrapper-side (free) reshapes so the kernel only sees natural layouts.
    h3 = head_emb.reshape(E, 1, relation_dim)
    t3 = tail_emb.reshape(E, 1, entity_dim)
    r3 = rel_emb.reshape(E, relation_dim, entity_dim)
    if e_pad != E:
        pad = e_pad - E
        h3 = jnp.pad(h3, ((0, pad), (0, 0), (0, 0)))
        t3 = jnp.pad(t3, ((0, pad), (0, 0), (0, 0)))
        r3 = jnp.pad(r3, ((0, pad), (0, 0), (0, 0)))

    # Only raise the scoped-VMEM limit when the double-buffered working set
    # would not fit the smallest default (v5e: 16 MiB).
    r_block_bytes = tile_e * relation_dim * entity_dim * itemsize
    est_bytes = 2 * r_block_bytes + (2 << 20)
    vmem_limit = None
    if est_bytes > 12 * 1024 * 1024:
        vmem_limit = min(est_bytes + (4 << 20), 96 * 1024 * 1024)

    scores = pl.pallas_call(
        _rescal_edge_kernel,
        out_shape=jax.ShapeDtypeStruct((e_pad, 1, 1), out_dtype),
        grid_spec=pltpu.PrefetchScalarGridSpec(
            num_scalar_prefetch=0,
            grid=(grid_e,),
            in_specs=[
                pl.BlockSpec((tile_e, 1, relation_dim), lambda i: (i, 0, 0)),
                pl.BlockSpec((tile_e, relation_dim, entity_dim),
                             lambda i: (i, 0, 0)),
                pl.BlockSpec((tile_e, 1, entity_dim), lambda i: (i, 0, 0)),
            ],
            out_specs=pl.BlockSpec((tile_e, 1, 1), lambda i: (i, 0, 0)),
        ),
        compiler_params=pltpu.CompilerParams(
            dimension_semantics=("parallel",),
            vmem_limit_bytes=vmem_limit,
        ),
    )(h3, r3, t3)

    return scores.reshape(e_pad)[:E]


def _rescal_score_ref(head_emb, rel_emb, tail_emb, relation_dim, entity_dim):
    """Pure-JAX reference mirroring RESCALScore.edge_func."""
    E = head_emb.shape[0]
    r3 = rel_emb.reshape(E, relation_dim, entity_dim)
    rt = jnp.einsum("eij,ej->ei", r3, tail_emb,
                    precision=jax.lax.Precision.HIGHEST)
    return jnp.sum(head_emb * rt, axis=-1)


if __name__ == "__main__":
    # Small synthetic edge batch: E edges; RESCAL stores a (D x D) relation
    # matrix per edge, flattened to (E, D*D).  relation_dim == entity_dim is
    # required by edge_func's elementwise product.
    E = 50   # deliberately not a multiple of the edge tile (exercises padding)
    D = 64

    key = jax.random.PRNGKey(0)
    kh, kr, kt = jax.random.split(key, 3)
    # bf16-representable f32 values keep the MXU f32 path bit-compatible with
    # the f32 reference up to accumulation-order rounding.
    head_emb = jax.random.normal(kh, (E, D), jnp.float32).astype(
        jnp.bfloat16).astype(jnp.float32)
    tail_emb = jax.random.normal(kt, (E, D), jnp.float32).astype(
        jnp.bfloat16).astype(jnp.float32)
    rel_emb = jax.random.normal(kr, (E, D * D), jnp.float32).astype(
        jnp.bfloat16).astype(jnp.float32)

    scores = rescal_score(head_emb, rel_emb, tail_emb,
                          relation_dim=D, entity_dim=D)
    scores = jax.block_until_ready(scores)

    ref = _rescal_score_ref(head_emb, rel_emb, tail_emb, D, D)
    assert scores.shape == (E,)
    assert jnp.allclose(scores, ref, rtol=1e-4, atol=1e-2), (
        "mismatch vs reference: max abs err = "
        f"{jnp.max(jnp.abs(scores - ref))}")

    print("KERNEL_OK")
</pallas_src>

<mosaic_0001>
module attributes {stable_mosaic.version = 11 : i64} {
  func.func @_rescal_edge_kernel(%arg0: i32, %arg1: memref<24x1x64xf32, #tpu.memory_space<vmem>>, %arg2: memref<24x64x64xf32, #tpu.memory_space<vmem>>, %arg3: memref<24x1x64xf32, #tpu.memory_space<vmem>>, %arg4: memref<24x1x1xf32, #tpu.memory_space<vmem>>) attributes {dimension_semantics = [#tpu.dimension_semantics<parallel>], iteration_bounds = array<i64: 3>, scalar_prefetch = 0 : i64, scratch_operands = 0 : i64, tpu.core_type = #tpu.core_type<tc>, window_params = [{transform_indices = @transform_0, window_bounds = array<i64: 24, 1, 64>}, {transform_indices = @transform_1, window_bounds = array<i64: 24, 64, 64>}, {transform_indices = @transform_2, window_bounds = array<i64: 24, 1, 64>}, {transform_indices = @transform_3, window_bounds = array<i64: 24, 1, 1>}]} {
    %c0 = arith.constant 0 : index
    %c0_0 = arith.constant 0 : index
    %c0_1 = arith.constant 0 : index
    %0 = vector.load %arg1[%c0, %c0_0, %c0_1] : memref<24x1x64xf32, #tpu.memory_space<vmem>>, vector<24x1x64xf32>
    %c0_2 = arith.constant 0 : index
    %c0_3 = arith.constant 0 : index
    %c0_4 = arith.constant 0 : index
    %1 = vector.load %arg2[%c0_2, %c0_3, %c0_4] : memref<24x64x64xf32, #tpu.memory_space<vmem>>, vector<24x64x64xf32>
    %c0_5 = arith.constant 0 : index
    %c0_6 = arith.constant 0 : index
    %c0_7 = arith.constant 0 : index
    %2 = vector.load %arg3[%c0_5, %c0_6, %c0_7] : memref<24x1x64xf32, #tpu.memory_space<vmem>>, vector<24x1x64xf32>
    "tpu.trace_start"() <{level = 10 : i32, message = "bxr,brc->bxc"}> : () -> ()
    %cst = arith.constant dense<0.000000e+00> : vector<24x1x64xf32>
    %3 = tpu.matmul %0, %1, %cst {dimension_numbers = #tpu.dot_dimension_numbers<[2], [1], [1], [2], [0, 0, 0, 1, 1, 2], [0], [0]>} : vector<24x1x64xf32>, vector<24x64x64xf32>, vector<24x1x64xf32> -> vector<24x1x64xf32>
    "tpu.trace_stop"() : () -> ()
    %4 = arith.mulf %3, %2 : vector<24x1x64xf32>
    %cst_8 = arith.constant dense<0.000000e+00> : vector<24x1xf32>
    %5 = vector.multi_reduction <add>, %4, %cst_8 [2] : vector<24x1x64xf32> to vector<24x1xf32>
    %6 = vector.shape_cast %5 : vector<24x1xf32> to vector<24x1x1xf32>
    %c0_9 = arith.constant 0 : index
    %c0_10 = arith.constant 0 : index
    %c0_11 = arith.constant 0 : index
    %7 = vector.load %arg4[%c0_9, %c0_10, %c0_11] : memref<24x1x1xf32, #tpu.memory_space<vmem>>, vector<24x1x1xf32>
    tpu.vector_store %arg4[%c0_9, %c0_10, %c0_11], %6 {strides = array<i32>} : memref<24x1x1xf32, #tpu.memory_space<vmem>>, vector<24x1x1xf32>,
    return
  }
  func.func @transform_0(%arg0: i32) -> (i32, i32, i32) {
    %c0_i32 = arith.constant 0 : i32
    %c0_i32_0 = arith.constant 0 : i32
    %c0_i32_1 = arith.constant 0 : i32
    return %arg0, %c0_i32, %c0_i32_0 : i32, i32, i32
  }
  func.func @transform_1(%arg0: i32) -> (i32, i32, i32) {
    %c0_i32 = arith.constant 0 : i32
    %c0_i32_0 = arith.constant 0 : i32
    %c0_i32_1 = arith.constant 0 : i32
    return %arg0, %c0_i32, %c0_i32_0 : i32, i32, i32
  }
  func.func @transform_2(%arg0: i32) -> (i32, i32, i32) {
    %c0_i32 = arith.constant 0 : i32
    %c0_i32_0 = arith.constant 0 : i32
    %c0_i32_1 = arith.constant 0 : i32
    return %arg0, %c0_i32, %c0_i32_0 : i32, i32, i32
  }
  func.func @transform_3(%arg0: i32) -> (i32, i32, i32) {
    %c0_i32 = arith.constant 0 : i32
    %c0_i32_0 = arith.constant 0 : i32
    %c0_i32_1 = arith.constant 0 : i32
    return %arg0, %c0_i32, %c0_i32_0 : i32, i32, i32
  }
}

</mosaic_0001>

<llo_original>
// kernel: tpu_custom_call.1
$region0: #{tpu_custom_call.1}
  #allocation0 [shape = 'u32[]', space=smem, size = 0x4, offset = 0x4, fixed_abs, tag = 'smem constant byte address 0x4 - core index']
  #allocation1 [shape = 'u32[144,128]{1,0:T(1,128)}', space=vmem, size = 0x12000, scoped, tag = 'internal scratch']
  %s0 = inlined_call_operand.vmem [shape: f32[72,1,64], index: 0, kind: input, shape index: {}]
  %s1 = inlined_call_operand.vmem [shape: f32[72,64,64], index: 1, kind: input, shape index: {}]
  %s2 = inlined_call_operand.vmem [shape: f32[72,1,64], index: 2, kind: input, shape index: {}]
  %s3 = inlined_call_operand.vmem [shape: f32[72,1,1], index: 3, kind: output, shape index: {}]
  %s4 = sld [smem:[#allocation0]]
  $region45: #{tpu_custom_call.1} parent=0
    _
  %s6 = ssub.s32 1, %s4
  %s7 = scalar_select 0, %s6, %s4
  loop: start=0, step=1, limit=5
  $region2: #{tpu_custom_call.1} parent=0 // loop_pre_header
    _
  $region3: #{tpu_custom_call.1} parent=0 // loop_header
    %s9 = sphi 0, %s13
    %p10 = scmp.ge.s32.totalorder %s9, 5
    %s19 = sphi 0, %s21
    %s22 = sphi 0, %s19
    %s23 = sphi 0, %s22
    %s39 = sphi 0, %s23
    %s45 = sphi 0, %s47
    %s48 = sphi 0, %s45
    %s49 = sphi 0, %s48
    %s65 = sphi 0, %s49
    %s71 = sphi 0, %s73
    %s74 = sphi 0, %s71
    %s75 = sphi 0, %s74
    %s91 = sphi 0, %s75
    %s97 = sphi 0, %s99
    %s100 = sphi 0, %s97
    %s101 = sphi 0, %s100
    %s117 = sphi 0, %s101
  $region4: #{tpu_custom_call.1} parent=0 // loop_header_branch
    %12 = sbr.rel (%p10) target = $region8
  $region5: #{tpu_custom_call.1} parent=0 // loop_body
    %s14 = ssub.s32 %s9, 1
    %s15 = ssub.s32 %s9, 2
    %s16 = sadd.s32 %s9, 1
    %s17 = ssub.s32 %s9, %s16
    %p18 = scmp.eq.s32.totalorder %s17, 0
    %s20 = sadd.s32 %s19, 1
    %s21 = scalar_select %p18, %s19, %s20
    %p24 = pneg %p18
    %p25 = scmp.eq.s32.totalorder %s9, 2
    %p26 = por %p24, %p25
    %p27 = scmp.ne.s32.totalorder %s19, %s22
    %p28 = scmp.eq.s32.totalorder %s9, 0
    %p29 = por %p27, %p28
    %p30 = scmp.ne.s32.totalorder %s19, %s22
    %p31 = scmp.eq.s32.totalorder %s14, 2
    %p32 = por %p30, %p31
    %p33 = scmp.ne.s32.totalorder %s22, %s23
    %p34 = scmp.eq.s32.totalorder %s14, 0
    %p35 = por %p33, %p34
    %p36 = scmp.ne.s32.totalorder %s22, %s23
    %p37 = scmp.eq.s32.totalorder %s15, 2
    %p38 = por %p36, %p37
    %p40 = scmp.ne.s32.totalorder %s23, %s39
    %p41 = scmp.eq.s32.totalorder %s15, 0
    %p42 = por %p40, %p41
    %s43 = ssub.s32 %s9, %s16
    %p44 = scmp.eq.s32.totalorder %s43, 0
    %s46 = sadd.s32 %s45, 1
    %s47 = scalar_select %p44, %s45, %s46
    %p50 = pneg %p44
    %p51 = scmp.eq.s32.totalorder %s9, 2
    %p52 = por %p50, %p51
    %p53 = scmp.ne.s32.totalorder %s45, %s48
    %p54 = scmp.eq.s32.totalorder %s9, 0
    %p55 = por %p53, %p54
    %p56 = scmp.ne.s32.totalorder %s45, %s48
    %p57 = scmp.eq.s32.totalorder %s14, 2
    %p58 = por %p56, %p57
    %p59 = scmp.ne.s32.totalorder %s48, %s49
    %p60 = scmp.eq.s32.totalorder %s14, 0
    %p61 = por %p59, %p60
    %p62 = scmp.ne.s32.totalorder %s48, %s49
    %p63 = scmp.eq.s32.totalorder %s15, 2
    %p64 = por %p62, %p63
    %p66 = scmp.ne.s32.totalorder %s49, %s65
    %p67 = scmp.eq.s32.totalorder %s15, 0
    %p68 = por %p66, %p67
    %s69 = ssub.s32 %s9, %s16
    %p70 = scmp.eq.s32.totalorder %s69, 0
    %s72 = sadd.s32 %s71, 1
    %s73 = scalar_select %p70, %s71, %s72
    %p76 = pneg %p70
    %p77 = scmp.eq.s32.totalorder %s9, 2
    %p78 = por %p76, %p77
    %p79 = scmp.ne.s32.totalorder %s71, %s74
    %p80 = scmp.eq.s32.totalorder %s9, 0
    %p81 = por %p79, %p80
    %p82 = scmp.ne.s32.totalorder %s71, %s74
    %p83 = scmp.eq.s32.totalorder %s14, 2
    %p84 = por %p82, %p83
    %p85 = scmp.ne.s32.totalorder %s74, %s75
    %p86 = scmp.eq.s32.totalorder %s14, 0
    %p87 = por %p85, %p86
    %p88 = scmp.ne.s32.totalorder %s74, %s75
    %p89 = scmp.eq.s32.totalorder %s15, 2
    %p90 = por %p88, %p89
    %p92 = scmp.ne.s32.totalorder %s75, %s91
    %p93 = scmp.eq.s32.totalorder %s15, 0
    %p94 = por %p92, %p93
    %s95 = ssub.s32 %s9, %s16
    %p96 = scmp.eq.s32.totalorder %s95, 0
    %s98 = sadd.s32 %s97, 1
    %s99 = scalar_select %p96, %s97, %s98
    %p102 = pneg %p96
    %p103 = scmp.eq.s32.totalorder %s9, 2
    %p104 = por %p102, %p103
    %p105 = scmp.ne.s32.totalorder %s97, %s100
    %p106 = scmp.eq.s32.totalorder %s9, 0
    %p107 = por %p105, %p106
    %p108 = scmp.ne.s32.totalorder %s97, %s100
    %p109 = scmp.eq.s32.totalorder %s14, 2
    %p110 = por %p108, %p109
    %p111 = scmp.ne.s32.totalorder %s100, %s101
    %p112 = scmp.eq.s32.totalorder %s14, 0
    %p113 = por %p111, %p112
    %p114 = scmp.ne.s32.totalorder %s100, %s101
    %p115 = scmp.eq.s32.totalorder %s15, 2
    %p116 = por %p114, %p115
    %p118 = scmp.ne.s32.totalorder %s101, %s117
    %p119 = scmp.eq.s32.totalorder %s15, 0
    %p120 = por %p118, %p119
    %p121 = scmp.le.s32.totalorder 1, %s9
    %p122 = scmp.lt.s32.totalorder %s9, 4
    %p123 = pnand %p121, %p122
    %p124 = pneg %p123
    // Predicated region
    $region9: #{tpu_custom_call.1} parent=5 // pred_check
      _
    $region10: #{tpu_custom_call.1} parent=5 // pred_check_branch
      %126 = sbr.rel (%p123) target = $region12
    $region11: #{tpu_custom_call.1} parent=5 // pred_region
      %s127 = ssub.s32 %s9, 1
    $region12: #{tpu_custom_call.1} parent=5 // pred_fallthru
      _
    %p128 = scmp.lt.s32.totalorder %s9, 3
    // Predicated region
    $region13: #{tpu_custom_call.1} parent=5 // pred_check
      %p129 = pneg %p128
    $region14: #{tpu_custom_call.1} parent=5 // pred_check_branch
      %131 = sbr.rel (%p129) target = $region16
    $region15: #{tpu_custom_call.1} parent=5 // pred_region
      // Predicated region
      $region17: #{tpu_custom_call.1} parent=15 // pred_check
        %p132 = pneg %p29
      $region18: #{tpu_custom_call.1} parent=15 // pred_check_branch
        %134 = sbr.rel (%p132) target = $region20
      $region19: #{tpu_custom_call.1} parent=15 // pred_region
        %s135 = smul.u32 24, %s9
        %p136 = scmp.lt.s32.totalorder %s135, 71
        %s137 = scalar_select %p136, %s135, 71
        %s138 = scalar_lea.vmem %s0, %s137
        %s139 = smul.u32 24, %s9
      $region20: #{tpu_custom_call.1} parent=15 // pred_fallthru
        _
      // Predicated region
      $region21: #{tpu_custom_call.1} parent=15 // pred_check
        %p140 = pneg %p55
      $region22: #{tpu_custom_call.1} parent=15 // pred_check_branch
        %142 = sbr.rel (%p140) target = $region24
      $region23: #{tpu_custom_call.1} parent=15 // pred_region
        %s143 = smul.u32 24, %s9
        %p144 = scmp.lt.s32.totalorder %s143, 71
        %s145 = scalar_select %p144, %s143, 71
        %s146 = smul.addr %s145, 8
        %s147 = smul.addr %s146, 8
        %s148 = scalar_lea.vmem %s1, %s147
        %s149 = smul.u32 24, %s9
      $region24: #{tpu_custom_call.1} parent=15 // pred_fallthru
        _
      // Predicated region
      $region25: #{tpu_custom_call.1} parent=15 // pred_check
        %p150 = pneg %p81
      $region26: #{tpu_custom_call.1} parent=15 // pred_check_branch
        %152 = sbr.rel (%p150) target = $region28
      $region27: #{tpu_custom_call.1} parent=15 // pred_region
        %s153 = smul.u32 24, %s9
        %p154 = scmp.lt.s32.totalorder %s153, 71
        %s155 = scalar_select %p154, %s153, 71
        %s156 = scalar_lea.vmem %s2, %s155
        %s157 = smul.u32 24, %s9
      $region28: #{tpu_custom_call.1} parent=15 // pred_fallthru
        _
    $region16: #{tpu_custom_call.1} parent=5 // pred_fallthru
      _
    %p158 = scmp.le.s32.totalorder 1, %s9
    %p159 = scmp.lt.s32.totalorder %s9, 4
    %p160 = pnand %p158, %p159
    %p161 = pneg %p160
    // Predicated region
    $region29: #{tpu_custom_call.1} parent=5 // pred_check
      _
    $region30: #{tpu_custom_call.1} parent=5 // pred_check_branch
      %163 = sbr.rel (%p160) target = $region32
    $region31: #{tpu_custom_call.1} parent=5 // pred_region
      %s164 = ssub.s32 %s9, 1
      %s165 = smul.u32 24, %s14
      %p166 = scmp.lt.s32.totalorder %s165, 71
      %s167 = scalar_select %p166, %s165, 71
      %s168 = scalar_lea.vmem %s0, %s167
      %p169 = pneg %p35
      %p170 = pneg %p32
      %s171 = smul.u32 24, %s14
      %p172 = scmp.lt.s32.totalorder %s171, 71
      %s173 = scalar_select %p172, %s171, 71
      %s174 = smul.addr %s173, 8
      %s175 = smul.addr %s174, 8
      %s176 = scalar_lea.vmem %s1, %s175
      %p177 = pneg %p61
      %p178 = pneg %p58
      %s179 = smul.u32 24, %s14
      %p180 = scmp.lt.s32.totalorder %s179, 71
      %s181 = scalar_select %p180, %s179, 71
      %s182 = scalar_lea.vmem %s2, %s181
      %p183 = pneg %p87
      %p184 = pneg %p84
      %p185 = pneg %p113
      %p186 = pneg %p110
      %s187 = smul.u32 24, %s14
      %p188 = scmp.lt.s32.totalorder %s187, 71
      %s189 = scalar_select %p188, %s187, 71
      %s190 = scalar_lea.vmem %s3, %s189
      %s191 = smul.u32 24, %s14
      %p192 = scmp.lt.s32.totalorder %s191, 71
      %s193 = scalar_select %p192, %s191, 71
      %s194 = scalar_lea.vmem %s0, %s193
      %s195 = smul.u32 24, %s14
      %s196 = smul.u32 24, %s14
      %p197 = scmp.lt.s32.totalorder %s196, 71
      %s198 = scalar_select %p197, %s196, 71
      %s199 = smul.addr %s198, 8
      %s200 = smul.addr %s199, 8
      %s201 = scalar_lea.vmem %s1, %s200
      %s202 = smul.u32 24, %s14
      %s203 = smul.u32 24, %s14
      %p204 = scmp.lt.s32.totalorder %s203, 71
      %s205 = scalar_select %p204, %s203, 71
      %s206 = scalar_lea.vmem %s2, %s205
      %s207 = smul.u32 24, %s14
      %s208 = smul.u32 24, %s14
      %p209 = scmp.lt.s32.totalorder %s208, 71
      %s210 = scalar_select %p209, %s208, 71
      %s211 = scalar_lea.vmem %s3, %s210
      %s212 = smul.u32 24, %s14
      %v213 = vld [vmem:[%s194] sm:$0x1]
      %v214 = vld [vmem:[%s194 + $0x1] sm:$0x1]
      %v215 = vld [vmem:[%s194 + $0x2] sm:$0x1]
      %v216 = vld [vmem:[%s194 + $0x3] sm:$0x1]
      %v217 = vld [vmem:[%s194 + $0x4] sm:$0x1]
      %v218 = vld [vmem:[%s194 + $0x5] sm:$0x1]
      %v219 = vld [vmem:[%s194 + $0x6] sm:$0x1]
      %v220 = vld [vmem:[%s194 + $0x7] sm:$0x1]
      %v221 = vld [vmem:[%s194 + $0x8] sm:$0x1]
      %v222 = vld [vmem:[%s194 + $0x9] sm:$0x1]
      %v223 = vld [vmem:[%s194 + $0xa] sm:$0x1]
      %v224 = vld [vmem:[%s194 + $0xb] sm:$0x1]
      %v225 = vld [vmem:[%s194 + $0xc] sm:$0x1]
      %v226 = vld [vmem:[%s194 + $0xd] sm:$0x1]
      %v227 = vld [vmem:[%s194 + $0xe] sm:$0x1]
      %v228 = vld [vmem:[%s194 + $0xf] sm:$0x1]
      %v229 = vld [vmem:[%s194 + $0x10] sm:$0x1]
      %v230 = vld [vmem:[%s194 + $0x11] sm:$0x1]
      %v231 = vld [vmem:[%s194 + $0x12] sm:$0x1]
      %v232 = vld [vmem:[%s194 + $0x13] sm:$0x1]
      %v233 = vld [vmem:[%s194 + $0x14] sm:$0x1]
      %v234 = vld [vmem:[%s194 + $0x15] sm:$0x1]
      %v235 = vld [vmem:[%s194 + $0x16] sm:$0x1]
      %v236 = vld [vmem:[%s194 + $0x17] sm:$0x1]
      %v237 = vld [vmem:[%s201] sm:$0xff]
      %v238 = vld [vmem:[%s201 + $0x8] sm:$0xff]
      %v239 = vld [vmem:[%s201 + $0x10] sm:$0xff]
      %v240 = vld [vmem:[%s201 + $0x18] sm:$0xff]
      %v241 = vld [vmem:[%s201 + $0x20] sm:$0xff]
      %v242 = vld [vmem:[%s201 + $0x28] sm:$0xff]
      %v243 = vld [vmem:[%s201 + $0x30] sm:$0xff]
      %v244 = vld [vmem:[%s201 + $0x38] sm:$0xff]
      %v245 = vld [vmem:[%s201 + $0x40] sm:$0xff]
      %v246 = vld [vmem:[%s201 + $0x48] sm:$0xff]
      %v247 = vld [vmem:[%s201 + $0x50] sm:$0xff]
      %v248 = vld [vmem:[%s201 + $0x58] sm:$0xff]
      %v249 = vld [vmem:[%s201 + $0x60] sm:$0xff]
      %v250 = vld [vmem:[%s201 + $0x68] sm:$0xff]
      %v251 = vld [vmem:[%s201 + $0x70] sm:$0xff]
      %v252 = vld [vmem:[%s201 + $0x78] sm:$0xff]
      %v253 = vld [vmem:[%s201 + $0x80] sm:$0xff]
      %v254 = vld [vmem:[%s201 + $0x88] sm:$0xff]
      %v255 = vld [vmem:[%s201 + $0x90] sm:$0xff]
      %v256 = vld [vmem:[%s201 + $0x98] sm:$0xff]
      %v257 = vld [vmem:[%s201 + $0xa0] sm:$0xff]
      %v258 = vld [vmem:[%s201 + $0xa8] sm:$0xff]
      %v259 = vld [vmem:[%s201 + $0xb0] sm:$0xff]
      %v260 = vld [vmem:[%s201 + $0xb8] sm:$0xff]
      %v261 = vld [vmem:[%s201 + $0xc0] sm:$0xff]
      %v262 = vld [vmem:[%s201 + $0xc8] sm:$0xff]
      %v263 = vld [vmem:[%s201 + $0xd0] sm:$0xff]
      %v264 = vld [vmem:[%s201 + $0xd8] sm:$0xff]
      %v265 = vld [vmem:[%s201 + $0xe0] sm:$0xff]
      %v266 = vld [vmem:[%s201 + $0xe8] sm:$0xff]
      %v267 = vld [vmem:[%s201 + $0xf0] sm:$0xff]
      %v268 = vld [vmem:[%s201 + $0xf8] sm:$0xff]
      %v269 = vld [vmem:[%s201 + $0x100] sm:$0xff]
      %v270 = vld [vmem:[%s201 + $0x108] sm:$0xff]
      %v271 = vld [vmem:[%s201 + $0x110] sm:$0xff]
      %v272 = vld [vmem:[%s201 + $0x118] sm:$0xff]
      %v273 = vld [vmem:[%s201 + $0x120] sm:$0xff]
      %v274 = vld [vmem:[%s201 + $0x128] sm:$0xff]
      %v275 = vld [vmem:[%s201 + $0x130] sm:$0xff]
      %v276 = vld [vmem:[%s201 + $0x138] sm:$0xff]
      %v277 = vld [vmem:[%s201 + $0x140] sm:$0xff]
      %v278 = vld [vmem:[%s201 + $0x148] sm:$0xff]
      %v279 = vld [vmem:[%s201 + $0x150] sm:$0xff]
      %v280 = vld [vmem:[%s201 + $0x158] sm:$0xff]
      %v281 = vld [vmem:[%s201 + $0x160] sm:$0xff]
      %v282 = vld [vmem:[%s201 + $0x168] sm:$0xff]
      %v283 = vld [vmem:[%s201 + $0x170] sm:$0xff]
      %v284 = vld [vmem:[%s201 + $0x178] sm:$0xff]
      %v285 = vld [vmem:[%s201 + $0x180] sm:$0xff]
      %v286 = vld [vmem:[%s201 + $0x188] sm:$0xff]
      %v287 = vld [vmem:[%s201 + $0x190] sm:$0xff]
      %v288 = vld [vmem:[%s201 + $0x198] sm:$0xff]
      %v289 = vld [vmem:[%s201 + $0x1a0] sm:$0xff]
      %v290 = vld [vmem:[%s201 + $0x1a8] sm:$0xff]
      %v291 = vld [vmem:[%s201 + $0x1b0] sm:$0xff]
      %v292 = vld [vmem:[%s201 + $0x1b8] sm:$0xff]
      %v293 = vld [vmem:[%s201 + $0x1c0] sm:$0xff]
      %v294 = vld [vmem:[%s201 + $0x1c8] sm:$0xff]
      %v295 = vld [vmem:[%s201 + $0x1d0] sm:$0xff]
      %v296 = vld [vmem:[%s201 + $0x1d8] sm:$0xff]
      %v297 = vld [vmem:[%s201 + $0x1e0] sm:$0xff]
      %v298 = vld [vmem:[%s201 + $0x1e8] sm:$0xff]
      %v299 = vld [vmem:[%s201 + $0x1f0] sm:$0xff]
      %v300 = vld [vmem:[%s201 + $0x1f8] sm:$0xff]
      %v301 = vld [vmem:[%s201 + $0x200] sm:$0xff]
      %v302 = vld [vmem:[%s201 + $0x208] sm:$0xff]
      %v303 = vld [vmem:[%s201 + $0x210] sm:$0xff]
      %v304 = vld [vmem:[%s201 + $0x218] sm:$0xff]
      %v305 = vld [vmem:[%s201 + $0x220] sm:$0xff]
      %v306 = vld [vmem:[%s201 + $0x228] sm:$0xff]
      %v307 = vld [vmem:[%s201 + $0x230] sm:$0xff]
      %v308 = vld [vmem:[%s201 + $0x238] sm:$0xff]
      %v309 = vld [vmem:[%s201 + $0x240] sm:$0xff]
      %v310 = vld [vmem:[%s201 + $0x248] sm:$0xff]
      %v311 = vld [vmem:[%s201 + $0x250] sm:$0xff]
      %v312 = vld [vmem:[%s201 + $0x258] sm:$0xff]
      %v313 = vld [vmem:[%s201 + $0x260] sm:$0xff]
      %v314 = vld [vmem:[%s201 + $0x268] sm:$0xff]
      %v315 = vld [vmem:[%s201 + $0x270] sm:$0xff]
      %v316 = vld [vmem:[%s201 + $0x278] sm:$0xff]
      %v317 = vld [vmem:[%s201 + $0x280] sm:$0xff]
      %v318 = vld [vmem:[%s201 + $0x288] sm:$0xff]
      %v319 = vld [vmem:[%s201 + $0x290] sm:$0xff]
      %v320 = vld [vmem:[%s201 + $0x298] sm:$0xff]
      %v321 = vld [vmem:[%s201 + $0x2a0] sm:$0xff]
      %v322 = vld [vmem:[%s201 + $0x2a8] sm:$0xff]
      %v323 = vld [vmem:[%s201 + $0x2b0] sm:$0xff]
      %v324 = vld [vmem:[%s201 + $0x2b8] sm:$0xff]
      %v325 = vld [vmem:[%s201 + $0x2c0] sm:$0xff]
      %v326 = vld [vmem:[%s201 + $0x2c8] sm:$0xff]
      %v327 = vld [vmem:[%s201 + $0x2d0] sm:$0xff]
      %v328 = vld [vmem:[%s201 + $0x2d8] sm:$0xff]
      %v329 = vld [vmem:[%s201 + $0x2e0] sm:$0xff]
      %v330 = vld [vmem:[%s201 + $0x2e8] sm:$0xff]
      %v331 = vld [vmem:[%s201 + $0x2f0] sm:$0xff]
      %v332 = vld [vmem:[%s201 + $0x2f8] sm:$0xff]
      %v333 = vld [vmem:[%s201 + $0x300] sm:$0xff]
      %v334 = vld [vmem:[%s201 + $0x308] sm:$0xff]
      %v335 = vld [vmem:[%s201 + $0x310] sm:$0xff]
      %v336 = vld [vmem:[%s201 + $0x318] sm:$0xff]
      %v337 = vld [vmem:[%s201 + $0x320] sm:$0xff]
      %v338 = vld [vmem:[%s201 + $0x328] sm:$0xff]
      %v339 = vld [vmem:[%s201 + $0x330] sm:$0xff]
      %v340 = vld [vmem:[%s201 + $0x338] sm:$0xff]
      %v341 = vld [vmem:[%s201 + $0x340] sm:$0xff]
      %v342 = vld [vmem:[%s201 + $0x348] sm:$0xff]
      %v343 = vld [vmem:[%s201 + $0x350] sm:$0xff]
      %v344 = vld [vmem:[%s201 + $0x358] sm:$0xff]
      %v345 = vld [vmem:[%s201 + $0x360] sm:$0xff]
      %v346 = vld [vmem:[%s201 + $0x368] sm:$0xff]
      %v347 = vld [vmem:[%s201 + $0x370] sm:$0xff]
      %v348 = vld [vmem:[%s201 + $0x378] sm:$0xff]
      %v349 = vld [vmem:[%s201 + $0x380] sm:$0xff]
      %v350 = vld [vmem:[%s201 + $0x388] sm:$0xff]
      %v351 = vld [vmem:[%s201 + $0x390] sm:$0xff]
      %v352 = vld [vmem:[%s201 + $0x398] sm:$0xff]
      %v353 = vld [vmem:[%s201 + $0x3a0] sm:$0xff]
      %v354 = vld [vmem:[%s201 + $0x3a8] sm:$0xff]
      %v355 = vld [vmem:[%s201 + $0x3b0] sm:$0xff]
      %v356 = vld [vmem:[%s201 + $0x3b8] sm:$0xff]
      %v357 = vld [vmem:[%s201 + $0x3c0] sm:$0xff]
      %v358 = vld [vmem:[%s201 + $0x3c8] sm:$0xff]
      %v359 = vld [vmem:[%s201 + $0x3d0] sm:$0xff]
      %v360 = vld [vmem:[%s201 + $0x3d8] sm:$0xff]
      %v361 = vld [vmem:[%s201 + $0x3e0] sm:$0xff]
      %v362 = vld [vmem:[%s201 + $0x3e8] sm:$0xff]
      %v363 = vld [vmem:[%s201 + $0x3f0] sm:$0xff]
      %v364 = vld [vmem:[%s201 + $0x3f8] sm:$0xff]
      %v365 = vld [vmem:[%s201 + $0x400] sm:$0xff]
      %v366 = vld [vmem:[%s201 + $0x408] sm:$0xff]
      %v367 = vld [vmem:[%s201 + $0x410] sm:$0xff]
      %v368 = vld [vmem:[%s201 + $0x418] sm:$0xff]
      %v369 = vld [vmem:[%s201 + $0x420] sm:$0xff]
      %v370 = vld [vmem:[%s201 + $0x428] sm:$0xff]
      %v371 = vld [vmem:[%s201 + $0x430] sm:$0xff]
      %v372 = vld [vmem:[%s201 + $0x438] sm:$0xff]
      %v373 = vld [vmem:[%s201 + $0x440] sm:$0xff]
      %v374 = vld [vmem:[%s201 + $0x448] sm:$0xff]
      %v375 = vld [vmem:[%s201 + $0x450] sm:$0xff]
      %v376 = vld [vmem:[%s201 + $0x458] sm:$0xff]
      %v377 = vld [vmem:[%s201 + $0x460] sm:$0xff]
      %v378 = vld [vmem:[%s201 + $0x468] sm:$0xff]
      %v379 = vld [vmem:[%s201 + $0x470] sm:$0xff]
      %v380 = vld [vmem:[%s201 + $0x478] sm:$0xff]
      %v381 = vld [vmem:[%s201 + $0x480] sm:$0xff]
      %v382 = vld [vmem:[%s201 + $0x488] sm:$0xff]
      %v383 = vld [vmem:[%s201 + $0x490] sm:$0xff]
      %v384 = vld [vmem:[%s201 + $0x498] sm:$0xff]
      %v385 = vld [vmem:[%s201 + $0x4a0] sm:$0xff]
      %v386 = vld [vmem:[%s201 + $0x4a8] sm:$0xff]
      %v387 = vld [vmem:[%s201 + $0x4b0] sm:$0xff]
      %v388 = vld [vmem:[%s201 + $0x4b8] sm:$0xff]
      %v389 = vld [vmem:[%s201 + $0x4c0] sm:$0xff]
      %v390 = vld [vmem:[%s201 + $0x4c8] sm:$0xff]
      %v391 = vld [vmem:[%s201 + $0x4d0] sm:$0xff]
      %v392 = vld [vmem:[%s201 + $0x4d8] sm:$0xff]
      %v393 = vld [vmem:[%s201 + $0x4e0] sm:$0xff]
      %v394 = vld [vmem:[%s201 + $0x4e8] sm:$0xff]
      %v395 = vld [vmem:[%s201 + $0x4f0] sm:$0xff]
      %v396 = vld [vmem:[%s201 + $0x4f8] sm:$0xff]
      %v397 = vld [vmem:[%s201 + $0x500] sm:$0xff]
      %v398 = vld [vmem:[%s201 + $0x508] sm:$0xff]
      %v399 = vld [vmem:[%s201 + $0x510] sm:$0xff]
      %v400 = vld [vmem:[%s201 + $0x518] sm:$0xff]
      %v401 = vld [vmem:[%s201 + $0x520] sm:$0xff]
      %v402 = vld [vmem:[%s201 + $0x528] sm:$0xff]
      %v403 = vld [vmem:[%s201 + $0x530] sm:$0xff]
      %v404 = vld [vmem:[%s201 + $0x538] sm:$0xff]
      %v405 = vld [vmem:[%s201 + $0x540] sm:$0xff]
      %v406 = vld [vmem:[%s201 + $0x548] sm:$0xff]
      %v407 = vld [vmem:[%s201 + $0x550] sm:$0xff]
      %v408 = vld [vmem:[%s201 + $0x558] sm:$0xff]
      %v409 = vld [vmem:[%s201 + $0x560] sm:$0xff]
      %v410 = vld [vmem:[%s201 + $0x568] sm:$0xff]
      %v411 = vld [vmem:[%s201 + $0x570] sm:$0xff]
      %v412 = vld [vmem:[%s201 + $0x578] sm:$0xff]
      %v413 = vld [vmem:[%s201 + $0x580] sm:$0xff]
      %v414 = vld [vmem:[%s201 + $0x588] sm:$0xff]
      %v415 = vld [vmem:[%s201 + $0x590] sm:$0xff]
      %v416 = vld [vmem:[%s201 + $0x598] sm:$0xff]
      %v417 = vld [vmem:[%s201 + $0x5a0] sm:$0xff]
      %v418 = vld [vmem:[%s201 + $0x5a8] sm:$0xff]
      %v419 = vld [vmem:[%s201 + $0x5b0] sm:$0xff]
      %v420 = vld [vmem:[%s201 + $0x5b8] sm:$0xff]
      %v421 = vld [vmem:[%s201 + $0x5c0] sm:$0xff]
      %v422 = vld [vmem:[%s201 + $0x5c8] sm:$0xff]
      %v423 = vld [vmem:[%s201 + $0x5d0] sm:$0xff]
      %v424 = vld [vmem:[%s201 + $0x5d8] sm:$0xff]
      %v425 = vld [vmem:[%s201 + $0x5e0] sm:$0xff]
      %v426 = vld [vmem:[%s201 + $0x5e8] sm:$0xff]
      %v427 = vld [vmem:[%s201 + $0x5f0] sm:$0xff]
      %v428 = vld [vmem:[%s201 + $0x5f8] sm:$0xff]
      %v429 = vld [vmem:[%s206] sm:$0x1]
      %v430 = vld [vmem:[%s206 + $0x1] sm:$0x1]
      %v431 = vld [vmem:[%s206 + $0x2] sm:$0x1]
      %v432 = vld [vmem:[%s206 + $0x3] sm:$0x1]
      %v433 = vld [vmem:[%s206 + $0x4] sm:$0x1]
      %v434 = vld [vmem:[%s206 + $0x5] sm:$0x1]
      %v435 = vld [vmem:[%s206 + $0x6] sm:$0x1]
      %v436 = vld [vmem:[%s206 + $0x7] sm:$0x1]
      %v437 = vld [vmem:[%s206 + $0x8] sm:$0x1]
      %v438 = vld [vmem:[%s206 + $0x9] sm:$0x1]
      %v439 = vld [vmem:[%s206 + $0xa] sm:$0x1]
      %v440 = vld [vmem:[%s206 + $0xb] sm:$0x1]
      %v441 = vld [vmem:[%s206 + $0xc] sm:$0x1]
      %v442 = vld [vmem:[%s206 + $0xd] sm:$0x1]
      %v443 = vld [vmem:[%s206 + $0xe] sm:$0x1]
      %v444 = vld [vmem:[%s206 + $0xf] sm:$0x1]
      %v445 = vld [vmem:[%s206 + $0x10] sm:$0x1]
      %v446 = vld [vmem:[%s206 + $0x11] sm:$0x1]
      %v447 = vld [vmem:[%s206 + $0x12] sm:$0x1]
      %v448 = vld [vmem:[%s206 + $0x13] sm:$0x1]
      %v449 = vld [vmem:[%s206 + $0x14] sm:$0x1]
      %v450 = vld [vmem:[%s206 + $0x15] sm:$0x1]
      %v451 = vld [vmem:[%s206 + $0x16] sm:$0x1]
      %v452 = vld [vmem:[%s206 + $0x17] sm:$0x1]
      %vm453 = vcmask 523264
      %v455 = vsel %vm453, %v213, 0
      %457 = vmatprep.subr.mxu0 0.0
      %458 = vmatpush1.msra.mxu0 %v237
      %459 = vmatprep.subr.mxu0 0.0
      %460 = vmatpush1.msra.mxu0 %v238
      %461 = vmatprep.subr.mxu0 0.0
      %462 = vmatpush1.msra.mxu0 %v239
      %463 = vmatprep.subr.mxu0 0.0
      %464 = vmatpush1.msra.mxu0 %v240
      %465 = vmatprep.subr.mxu0 0.0
      %466 = vmatpush1.msra.mxu0 %v241
      %467 = vmatprep.subr.mxu0 0.0
      %468 = vmatpush1.msra.mxu0 %v242
      %469 = vmatprep.subr.mxu0 0.0
      %470 = vmatpush1.msra.mxu0 %v243
      %471 = vmatprep.subr.mxu0 0.0
      %472 = vmatpush1.msra.mxu0 %v244
      %473 = vmatprep.subr.mxu0 0.0
      %474 = vmatpush1.msra.mxu0 0.0
      %475 = vmatprep.subr.mxu0 0.0
      %476 = vmatpush1.msra.mxu0 0.0
      %477 = vmatprep.subr.mxu0 0.0
      %478 = vmatpush1.msra.mxu0 0.0
      %479 = vmatprep.subr.mxu0 0.0
      %480 = vmatpush1.msra.mxu0 0.0
      %481 = vmatprep.subr.mxu0 0.0
      %482 = vmatpush1.msra.mxu0 0.0
      %483 = vmatprep.subr.mxu0 0.0
      %484 = vmatpush1.msra.mxu0 0.0
      %485 = vmatprep.subr.mxu0 0.0
      %486 = vmatpush1.msra.mxu0 0.0
      %487 = vmatprep.subr.mxu0 0.0
      %488 = vmatpush1.msra.mxu0 0.0
      %489 = vmatprep.subr.mxu0 0.0
      %490 = vmatpush1.msra.mxu0 0.0
      %491 = vmatprep.subr.mxu0 0.0
      %492 = vmatpush1.msra.mxu0 0.0
      %493 = vmatprep.subr.mxu0 0.0
      %494 = vmatpush1.msra.mxu0 0.0
      %495 = vmatprep.subr.mxu0 0.0
      %496 = vmatpush1.msra.mxu0 0.0
      %497 = vmatprep.subr.mxu0 0.0
      %498 = vmatpush1.msra.mxu0 0.0
      %499 = vmatprep.subr.mxu0 0.0
      %500 = vmatpush1.msra.mxu0 0.0
      %501 = vmatprep.subr.mxu0 0.0
      %502 = vmatpush1.msra.mxu0 0.0
      %503 = vmatprep.subr.mxu0 0.0
      %504 = vmatpush1.msra.mxu0 0.0
      %505 = vmatprep.subr.mxu0 0.0
      %506 = vmatpush1.msra.mxu0 0.0
      %507 = vmatprep.subr.mxu0 0.0
      %508 = vmatpush1.msra.mxu0 0.0
      %509 = vmatprep.subr.mxu0 0.0
      %510 = vmatpush1.msra.mxu0 0.0
      %511 = vmatprep.subr.mxu0 0.0
      %512 = vmatpush1.msra.mxu0 0.0
      %513 = vmatprep.subr.mxu0 0.0
      %514 = vmatpush1.msra.mxu0 0.0
      %515 = vmatprep.subr.mxu0 0.0
      %516 = vmatpush1.msra.mxu0 0.0
      %517 = vmatprep.subr.mxu0 0.0
      %518 = vmatpush1.msra.mxu0 0.0
      %519 = vmatprep.subr.mxu0 0.0
      %520 = vmatpush1.msra.mxu0 0.0
      %521 = vmatprep.mubr.f32.mxu0 0.0
      %522 = vmatmul.mubr.f32.gmra.mrb[0].mxu0 %v455
      %v523 = vpop.f32.mrb[0].mxu0
      %v524 = vadd.f32 0.0, %v523
      %v525 = vpop.f32.mrb[0].mxu0
      %526 = vdwg.mxu0
      %v528 = vsel %vm453, %v214, 0
      %530 = vmatprep.subr.mxu0 0.0
      %531 = vmatpush1.msra.mxu0 %v245
      %532 = vmatprep.subr.mxu0 0.0
      %533 = vmatpush1.msra.mxu0 %v246
      %534 = vmatprep.subr.mxu0 0.0
      %535 = vmatpush1.msra.mxu0 %v247
      %536 = vmatprep.subr.mxu0 0.0
      %537 = vmatpush1.msra.mxu0 %v248
      %538 = vmatprep.subr.mxu0 0.0
      %539 = vmatpush1.msra.mxu0 %v249
      %540 = vmatprep.subr.mxu0 0.0
      %541 = vmatpush1.msra.mxu0 %v250
      %542 = vmatprep.subr.mxu0 0.0
      %543 = vmatpush1.msra.mxu0 %v251
      %544 = vmatprep.subr.mxu0 0.0
      %545 = vmatpush1.msra.mxu0 %v252
      %546 = vmatprep.subr.mxu0 0.0
      %547 = vmatpush1.msra.mxu0 0.0
      %548 = vmatprep.subr.mxu0 0.0
      %549 = vmatpush1.msra.mxu0 0.0
      %550 = vmatprep.subr.mxu0 0.0
      %551 = vmatpush1.msra.mxu0 0.0
      %552 = vmatprep.subr.mxu0 0.0
      %553 = vmatpush1.msra.mxu0 0.0
      %554 = vmatprep.subr.mxu0 0.0
      %555 = vmatpush1.msra.mxu0 0.0
      %556 = vmatprep.subr.mxu0 0.0
      %557 = vmatpush1.msra.mxu0 0.0
      %558 = vmatprep.subr.mxu0 0.0
      %559 = vmatpush1.msra.mxu0 0.0
      %560 = vmatprep.subr.mxu0 0.0
      %561 = vmatpush1.msra.mxu0 0.0
      %562 = vmatprep.subr.mxu0 0.0
      %563 = vmatpush1.msra.mxu0 0.0
      %564 = vmatprep.subr.mxu0 0.0
      %565 = vmatpush1.msra.mxu0 0.0
      %566 = vmatprep.subr.mxu0 0.0
      %567 = vmatpush1.msra.mxu0 0.0
      %568 = vmatprep.subr.mxu0 0.0
      %569 = vmatpush1.msra.mxu0 0.0
      %570 = vmatprep.subr.mxu0 0.0
      %571 = vmatpush1.msra.mxu0 0.0
      %572 = vmatprep.subr.mxu0 0.0
      %573 = vmatpush1.msra.mxu0 0.0
      %574 = vmatprep.subr.mxu0 0.0
      %575 = vmatpush1.msra.mxu0 0.0
      %576 = vmatprep.subr.mxu0 0.0
      %577 = vmatpush1.msra.mxu0 0.0
      %578 = vmatprep.subr.mxu0 0.0
      %579 = vmatpush1.msra.mxu0 0.0
      %580 = vmatprep.subr.mxu0 0.0
      %581 = vmatpush1.msra.mxu0 0.0
      %582 = vmatprep.subr.mxu0 0.0
      %583 = vmatpush1.msra.mxu0 0.0
      %584 = vmatprep.subr.mxu0 0.0
      %585 = vmatpush1.msra.mxu0 0.0
      %586 = vmatprep.subr.mxu0 0.0
      %587 = vmatpush1.msra.mxu0 0.0
      %588 = vmatprep.subr.mxu0 0.0
      %589 = vmatpush1.msra.mxu0 0.0
      %590 = vmatprep.subr.mxu0 0.0
      %591 = vmatpush1.msra.mxu0 0.0
      %592 = vmatprep.subr.mxu0 0.0
      %593 = vmatpush1.msra.mxu0 0.0
      %594 = vmatprep.mubr.f32.mxu0 0.0
      %595 = vmatmul.mubr.f32.gmra.mrb[0].mxu0 %v528
      %v596 = vpop.f32.mrb[0].mxu0
      %v597 = vadd.f32 0.0, %v596
      %v598 = vpop.f32.mrb[0].mxu0
      %599 = vdwg.mxu0
      %v601 = vsel %vm453, %v215, 0
      %603 = vmatprep.subr.mxu0 0.0
      %604 = vmatpush1.msra.mxu0 %v253
      %605 = vmatprep.subr.mxu0 0.0
      %606 = vmatpush1.msra.mxu0 %v254
      %607 = vmatprep.subr.mxu0 0.0
      %608 = vmatpush1.msra.mxu0 %v255
      %609 = vmatprep.subr.mxu0 0.0
      %610 = vmatpush1.msra.mxu0 %v256
      %611 = vmatprep.subr.mxu0 0.0
      %612 = vmatpush1.msra.mxu0 %v257
      %613 = vmatprep.subr.mxu0 0.0
      %614 = vmatpush1.msra.mxu0 %v258
      %615 = vmatprep.subr.mxu0 0.0
      %616 = vmatpush1.msra.mxu0 %v259
      %617 = vmatprep.subr.mxu0 0.0
      %618 = vmatpush1.msra.mxu0 %v260
      %619 = vmatprep.subr.mxu0 0.0
      %620 = vmatpush1.msra.mxu0 0.0
      %621 = vmatprep.subr.mxu0 0.0
      %622 = vmatpush1.msra.mxu0 0.0
      %623 = vmatprep.subr.mxu0 0.0
      %624 = vmatpush1.msra.mxu0 0.0
      %625 = vmatprep.subr.mxu0 0.0
      %626 = vmatpush1.msra.mxu0 0.0
      %627 = vmatprep.subr.mxu0 0.0
      %628 = vmatpush1.msra.mxu0 0.0
      %629 = vmatprep.subr.mxu0 0.0
      %630 = vmatpush1.msra.mxu0 0.0
      %631 = vmatprep.subr.mxu0 0.0
      %632 = vmatpush1.msra.mxu0 0.0
      %633 = vmatprep.subr.mxu0 0.0
      %634 = vmatpush1.msra.mxu0 0.0
      %635 = vmatprep.subr.mxu0 0.0
      %636 = vmatpush1.msra.mxu0 0.0
      %637 = vmatprep.subr.mxu0 0.0
      %638 = vmatpush1.msra.mxu0 0.0
      %639 = vmatprep.subr.mxu0 0.0
      %640 = vmatpush1.msra.mxu0 0.0
      %641 = vmatprep.subr.mxu0 0.0
      %642 = vmatpush1.msra.mxu0 0.0
      %643 = vmatprep.subr.mxu0 0.0
      %644 = vmatpush1.msra.mxu0 0.0
      %645 = vmatprep.subr.mxu0 0.0
      %646 = vmatpush1.msra.mxu0 0.0
      %647 = vmatprep.subr.mxu0 0.0
      %648 = vmatpush1.msra.mxu0 0.0
      %649 = vmatprep.subr.mxu0 0.0
      %650 = vmatpush1.msra.mxu0 0.0
      %651 = vmatprep.subr.mxu0 0.0
      %652 = vmatpush1.msra.mxu0 0.0
      %653 = vmatprep.subr.mxu0 0.0
      %654 = vmatpush1.msra.mxu0 0.0
      %655 = vmatprep.subr.mxu0 0.0
      %656 = vmatpush1.msra.mxu0 0.0
      %657 = vmatprep.subr.mxu0 0.0
      %658 = vmatpush1.msra.mxu0 0.0
      %659 = vmatprep.subr.mxu0 0.0
      %660 = vmatpush1.msra.mxu0 0.0
      %661 = vmatprep.subr.mxu0 0.0
      %662 = vmatpush1.msra.mxu0 0.0
      %663 = vmatprep.subr.mxu0 0.0
      %664 = vmatpush1.msra.mxu0 0.0
      %665 = vmatprep.subr.mxu0 0.0
      %666 = vmatpush1.msra.mxu0 0.0
      %667 = vmatprep.mubr.f32.mxu0 0.0
      %668 = vmatmul.mubr.f32.gmra.mrb[0].mxu0 %v601
      %v669 = vpop.f32.mrb[0].mxu0
      %v670 = vadd.f32 0.0, %v669
      %v671 = vpop.f32.mrb[0].mxu0
      %672 = vdwg.mxu0
      %v674 = vsel %vm453, %v216, 0
      %676 = vmatprep.subr.mxu0 0.0
      %677 = vmatpush1.msra.mxu0 %v261
      %678 = vmatprep.subr.mxu0 0.0
      %679 = vmatpush1.msra.mxu0 %v262
      %680 = vmatprep.subr.mxu0 0.0
      %681 = vmatpush1.msra.mxu0 %v263
      %682 = vmatprep.subr.mxu0 0.0
      %683 = vmatpush1.msra.mxu0 %v264
      %684 = vmatprep.subr.mxu0 0.0
      %685 = vmatpush1.msra.mxu0 %v265
      %686 = vmatprep.subr.mxu0 0.0
      %687 = vmatpush1.msra.mxu0 %v266
      %688 = vmatprep.subr.mxu0 0.0
      %689 = vmatpush1.msra.mxu0 %v267
      %690 = vmatprep.subr.mxu0 0.0
      %691 = vmatpush1.msra.mxu0 %v268
      %692 = vmatprep.subr.mxu0 0.0
      %693 = vmatpush1.msra.mxu0 0.0
      %694 = vmatprep.subr.mxu0 0.0
      %695 = vmatpush1.msra.mxu0 0.0
      %696 = vmatprep.subr.mxu0 0.0
      %697 = vmatpush1.msra.mxu0 0.0
      %698 = vmatprep.subr.mxu0 0.0
      %699 = vmatpush1.msra.mxu0 0.0
      %700 = vmatprep.subr.mxu0 0.0
      %701 = vmatpush1.msra.mxu0 0.0
      %702 = vmatprep.subr.mxu0 0.0
      %703 = vmatpush1.msra.mxu0 0.0
      %704 = vmatprep.subr.mxu0 0.0
      %705 = vmatpush1.msra.mxu0 0.0
      %706 = vmatprep.subr.mxu0 0.0
      %707 = vmatpush1.msra.mxu0 0.0
      %708 = vmatprep.subr.mxu0 0.0
      %709 = vmatpush1.msra.mxu0 0.0
      %710 = vmatprep.subr.mxu0 0.0
      %711 = vmatpush1.msra.mxu0 0.0
      %712 = vmatprep.subr.mxu0 0.0
      %713 = vmatpush1.msra.mxu0 0.0
      %714 = vmatprep.subr.mxu0 0.0
      %715 = vmatpush1.msra.mxu0 0.0
      %716 = vmatprep.subr.mxu0 0.0
      %717 = vmatpush1.msra.mxu0 0.0
      %718 = vmatprep.subr.mxu0 0.0
      %719 = vmatpush1.msra.mxu0 0.0
      %720 = vmatprep.subr.mxu0 0.0
      %721 = vmatpush1.msra.mxu0 0.0
      %722 = vmatprep.subr.mxu0 0.0
      %723 = vmatpush1.msra.mxu0 0.0
      %724 = vmatprep.subr.mxu0 0.0
      %725 = vmatpush1.msra.mxu0 0.0
      %726 = vmatprep.subr.mxu0 0.0
      %727 = vmatpush1.msra.mxu0 0.0
      %728 = vmatprep.subr.mxu0 0.0
      %729 = vmatpush1.msra.mxu0 0.0
      %730 = vmatprep.subr.mxu0 0.0
      %731 = vmatpush1.msra.mxu0 0.0
      %732 = vmatprep.subr.mxu0 0.0
      %733 = vmatpush1.msra.mxu0 0.0
      %734 = vmatprep.subr.mxu0 0.0
      %735 = vmatpush1.msra.mxu0 0.0
      %736 = vmatprep.subr.mxu0 0.0
      %737 = vmatpush1.msra.mxu0 0.0
      %738 = vmatprep.subr.mxu0 0.0
      %739 = vmatpush1.msra.mxu0 0.0
      %740 = vmatprep.mubr.f32.mxu0 0.0
      %741 = vmatmul.mubr.f32.gmra.mrb[0].mxu0 %v674
      %v742 = vpop.f32.mrb[0].mxu0
      %v743 = vadd.f32 0.0, %v742
      %v744 = vpop.f32.mrb[0].mxu0
      %745 = vdwg.mxu0
      %v747 = vsel %vm453, %v217, 0
      %749 = vmatprep.subr.mxu0 0.0
      %750 = vmatpush1.msra.mxu0 %v269
      %751 = vmatprep.subr.mxu0 0.0
      %752 = vmatpush1.msra.mxu0 %v270
      %753 = vmatprep.subr.mxu0 0.0
      %754 = vmatpush1.msra.mxu0 %v271
      %755 = vmatprep.subr.mxu0 0.0
      %756 = vmatpush1.msra.mxu0 %v272
      %757 = vmatprep.subr.mxu0 0.0
      %758 = vmatpush1.msra.mxu0 %v273
      %759 = vmatprep.subr.mxu0 0.0
      %760 = vmatpush1.msra.mxu0 %v274
      %761 = vmatprep.subr.mxu0 0.0
      %762 = vmatpush1.msra.mxu0 %v275
      %763 = vmatprep.subr.mxu0 0.0
      %764 = vmatpush1.msra.mxu0 %v276
      %765 = vmatprep.subr.mxu0 0.0
      %766 = vmatpush1.msra.mxu0 0.0
      %767 = vmatprep.subr.mxu0 0.0
      %768 = vmatpush1.msra.mxu0 0.0
      %769 = vmatprep.subr.mxu0 0.0
      %770 = vmatpush1.msra.mxu0 0.0
      %771 = vmatprep.subr.mxu0 0.0
      %772 = vmatpush1.msra.mxu0 0.0
      %773 = vmatprep.subr.mxu0 0.0
      %774 = vmatpush1.msra.mxu0 0.0
      %775 = vmatprep.subr.mxu0 0.0
      %776 = vmatpush1.msra.mxu0 0.0
      %777 = vmatprep.subr.mxu0 0.0
      %778 = vmatpush1.msra.mxu0 0.0
      %779 = vmatprep.subr.mxu0 0.0
      %780 = vmatpush1.msra.mxu0 0.0
      %781 = vmatprep.subr.mxu0 0.0
      %782 = vmatpush1.msra.mxu0 0.0
      %783 = vmatprep.subr.mxu0 0.0
      %784 = vmatpush1.msra.mxu0 0.0
      %785 = vmatprep.subr.mxu0 0.0
      %786 = vmatpush1.msra.mxu0 0.0
      %787 = vmatprep.subr.mxu0 0.0
      %788 = vmatpush1.msra.mxu0 0.0
      %789 = vmatprep.subr.mxu0 0.0
      %790 = vmatpush1.msra.mxu0 0.0
      %791 = vmatprep.subr.mxu0 0.0
      %792 = vmatpush1.msra.mxu0 0.0
      %793 = vmatprep.subr.mxu0 0.0
      %794 = vmatpush1.msra.mxu0 0.0
      %795 = vmatprep.subr.mxu0 0.0
      %796 = vmatpush1.msra.mxu0 0.0
      %797 = vmatprep.subr.mxu0 0.0
      %798 = vmatpush1.msra.mxu0 0.0
      %799 = vmatprep.subr.mxu0 0.0
      %800 = vmatpush1.msra.mxu0 0.0
      %801 = vmatprep.subr.mxu0 0.0
      %802 = vmatpush1.msra.mxu0 0.0
      %803 = vmatprep.subr.mxu0 0.0
      %804 = vmatpush1.msra.mxu0 0.0
      %805 = vmatprep.subr.mxu0 0.0
      %806 = vmatpush1.msra.mxu0 0.0
      %807 = vmatprep.subr.mxu0 0.0
      %808 = vmatpush1.msra.mxu0 0.0
      %809 = vmatprep.subr.mxu0 0.0
      %810 = vmatpush1.msra.mxu0 0.0
      %811 = vmatprep.subr.mxu0 0.0
      %812 = vmatpush1.msra.mxu0 0.0
      %813 = vmatprep.mubr.f32.mxu0 0.0
      %814 = vmatmul.mubr.f32.gmra.mrb[0].mxu0 %v747
      %v815 = vpop.f32.mrb[0].mxu0
      %v816 = vadd.f32 0.0, %v815
      %v817 = vpop.f32.mrb[0].mxu0
      %818 = vdwg.mxu0
      %v820 = vsel %vm453, %v218, 0
      %822 = vmatprep.subr.mxu0 0.0
      %823 = vmatpush1.msra.mxu0 %v277
      %824 = vmatprep.subr.mxu0 0.0
      %825 = vmatpush1.msra.mxu0 %v278
      %826 = vmatprep.subr.mxu0 0.0
      %827 = vmatpush1.msra.mxu0 %v279
      %828 = vmatprep.subr.mxu0 0.0
      %829 = vmatpush1.msra.mxu0 %v280
      %830 = vmatprep.subr.mxu0 0.0
      %831 = vmatpush1.msra.mxu0 %v281
      %832 = vmatprep.subr.mxu0 0.0
      %833 = vmatpush1.msra.mxu0 %v282
      %834 = vmatprep.subr.mxu0 0.0
      %835 = vmatpush1.msra.mxu0 %v283
      %836 = vmatprep.subr.mxu0 0.0
      %837 = vmatpush1.msra.mxu0 %v284
      %838 = vmatprep.subr.mxu0 0.0
      %839 = vmatpush1.msra.mxu0 0.0
      %840 = vmatprep.subr.mxu0 0.0
      %841 = vmatpush1.msra.mxu0 0.0
      %842 = vmatprep.subr.mxu0 0.0
      %843 = vmatpush1.msra.mxu0 0.0
      %844 = vmatprep.subr.mxu0 0.0
      %845 = vmatpush1.msra.mxu0 0.0
      %846 = vmatprep.subr.mxu0 0.0
      %847 = vmatpush1.msra.mxu0 0.0
      %848 = vmatprep.subr.mxu0 0.0
      %849 = vmatpush1.msra.mxu0 0.0
      %850 = vmatprep.subr.mxu0 0.0
      %851 = vmatpush1.msra.mxu0 0.0
      %852 = vmatprep.subr.mxu0 0.0
      %853 = vmatpush1.msra.mxu0 0.0
      %854 = vmatprep.subr.mxu0 0.0
      %855 = vmatpush1.msra.mxu0 0.0
      %856 = vmatprep.subr.mxu0 0.0
      %857 = vmatpush1.msra.mxu0 0.0
      %858 = vmatprep.subr.mxu0 0.0
      %859 = vmatpush1.msra.mxu0 0.0
      %860 = vmatprep.subr.mxu0 0.0
      %861 = vmatpush1.msra.mxu0 0.0
      %862 = vmatprep.subr.mxu0 0.0
      %863 = vmatpush1.msra.mxu0 0.0
      %864 = vmatprep.subr.mxu0 0.0
      %865 = vmatpush1.msra.mxu0 0.0
      %866 = vmatprep.subr.mxu0 0.0
      %867 = vmatpush1.msra.mxu0 0.0
      %868 = vmatprep.subr.mxu0 0.0
      %869 = vmatpush1.msra.mxu0 0.0
      %870 = vmatprep.subr.mxu0 0.0
      %871 = vmatpush1.msra.mxu0 0.0
      %872 = vmatprep.subr.mxu0 0.0
      %873 = vmatpush1.msra.mxu0 0.0
      %874 = vmatprep.subr.mxu0 0.0
      %875 = vmatpush1.msra.mxu0 0.0
      %876 = vmatprep.subr.mxu0 0.0
      %877 = vmatpush1.msra.mxu0 0.0
      %878 = vmatprep.subr.mxu0 0.0
      %879 = vmatpush1.msra.mxu0 0.0
      %880 = vmatprep.subr.mxu0 0.0
      %881 = vmatpush1.msra.mxu0 0.0
      %882 = vmatprep.subr.mxu0 0.0
      %883 = vmatpush1.msra.mxu0 0.0
      %884 = vmatprep.subr.mxu0 0.0
      %885 = vmatpush1.msra.mxu0 0.0
      %886 = vmatprep.mubr.f32.mxu0 0.0
      %887 = vmatmul.mubr.f32.gmra.mrb[0].mxu0 %v820
      %v888 = vpop.f32.mrb[0].mxu0
      %v889 = vadd.f32 0.0, %v888
      %v890 = vpop.f32.mrb[0].mxu0
      %891 = vdwg.mxu0
      %v893 = vsel %vm453, %v219, 0
      %895 = vmatprep.subr.mxu0 0.0
      %896 = vmatpush1.msra.mxu0 %v285
      %897 = vmatprep.subr.mxu0 0.0
      %898 = vmatpush1.msra.mxu0 %v286
      %899 = vmatprep.subr.mxu0 0.0
      %900 = vmatpush1.msra.mxu0 %v287
      %901 = vmatprep.subr.mxu0 0.0
      %902 = vmatpush1.msra.mxu0 %v288
      %903 = vmatprep.subr.mxu0 0.0
      %904 = vmatpush1.msra.mxu0 %v289
      %905 = vmatprep.subr.mxu0 0.0
      %906 = vmatpush1.msra.mxu0 %v290
      %907 = vmatprep.subr.mxu0 0.0
      %908 = vmatpush1.msra.mxu0 %v291
      %909 = vmatprep.subr.mxu0 0.0
      %910 = vmatpush1.msra.mxu0 %v292
      %911 = vmatprep.subr.mxu0 0.0
      %912 = vmatpush1.msra.mxu0 0.0
      %913 = vmatprep.subr.mxu0 0.0
      %914 = vmatpush1.msra.mxu0 0.0
      %915 = vmatprep.subr.mxu0 0.0
      %916 = vmatpush1.msra.mxu0 0.0
      %917 = vmatprep.subr.mxu0 0.0
      %918 = vmatpush1.msra.mxu0 0.0
      %919 = vmatprep.subr.mxu0 0.0
      %920 = vmatpush1.msra.mxu0 0.0
      %921 = vmatprep.subr.mxu0 0.0
      %922 = vmatpush1.msra.mxu0 0.0
      %923 = vmatprep.subr.mxu0 0.0
      %924 = vmatpush1.msra.mxu0 0.0
      %925 = vmatprep.subr.mxu0 0.0
      %926 = vmatpush1.msra.mxu0 0.0
      %927 = vmatprep.subr.mxu0 0.0
      %928 = vmatpush1.msra.mxu0 0.0
      %929 = vmatprep.subr.mxu0 0.0
      %930 = vmatpush1.msra.mxu0 0.0
      %931 = vmatprep.subr.mxu0 0.0
      %932 = vmatpush1.msra.mxu0 0.0
      %933 = vmatprep.subr.mxu0 0.0
      %934 = vmatpush1.msra.mxu0 0.0
      %935 = vmatprep.subr.mxu0 0.0
      %936 = vmatpush1.msra.mxu0 0.0
      %937 = vmatprep.subr.mxu0 0.0
      %938 = vmatpush1.msra.mxu0 0.0
      %939 = vmatprep.subr.mxu0 0.0
      %940 = vmatpush1.msra.mxu0 0.0
      %941 = vmatprep.subr.mxu0 0.0
      %942 = vmatpush1.msra.mxu0 0.0
      %943 = vmatprep.subr.mxu0 0.0
      %944 = vmatpush1.msra.mxu0 0.0
      %945 = vmatprep.subr.mxu0 0.0
      %946 = vmatpush1.msra.mxu0 0.0
      %947 = vmatprep.subr.mxu0 0.0
      %948 = vmatpush1.msra.mxu0 0.0
      %949 = vmatprep.subr.mxu0 0.0
      %950 = vmatpush1.msra.mxu0 0.0
      %951 = vmatprep.subr.mxu0 0.0
      %952 = vmatpush1.msra.mxu0 0.0
      %953 = vmatprep.subr.mxu0 0.0
      %954 = vmatpush1.msra.mxu0 0.0
      %955 = vmatprep.subr.mxu0 0.0
      %956 = vmatpush1.msra.mxu0 0.0
      %957 = vmatprep.subr.mxu0 0.0
      %958 = vmatpush1.msra.mxu0 0.0
      %959 = vmatprep.mubr.f32.mxu0 0.0
      %960 = vmatmul.mubr.f32.gmra.mrb[0].mxu0 %v893
      %v961 = vpop.f32.mrb[0].mxu0
      %v962 = vadd.f32 0.0, %v961
      %v963 = vpop.f32.mrb[0].mxu0
      %964 = vdwg.mxu0
      %v966 = vsel %vm453, %v220, 0
      %968 = vmatprep.subr.mxu0 0.0
      %969 = vmatpush1.msra.mxu0 %v293
      %970 = vmatprep.subr.mxu0 0.0
      %971 = vmatpush1.msra.mxu0 %v294
      %972 = vmatprep.subr.mxu0 0.0
      %973 = vmatpush1.msra.mxu0 %v295
      %974 = vmatprep.subr.mxu0 0.0
      %975 = vmatpush1.msra.mxu0 %v296
      %976 = vmatprep.subr.mxu0 0.0
      %977 = vmatpush1.msra.mxu0 %v297
      %978 = vmatprep.subr.mxu0 0.0
      %979 = vmatpush1.msra.mxu0 %v298
      %980 = vmatprep.subr.mxu0 0.0
      %981 = vmatpush1.msra.mxu0 %v299
      %982 = vmatprep.subr.mxu0 0.0
      %983 = vmatpush1.msra.mxu0 %v300
      %984 = vmatprep.subr.mxu0 0.0
      %985 = vmatpush1.msra.mxu0 0.0
      %986 = vmatprep.subr.mxu0 0.0
      %987 = vmatpush1.msra.mxu0 0.0
      %988 = vmatprep.subr.mxu0 0.0
      %989 = vmatpush1.msra.mxu0 0.0
      %990 = vmatprep.subr.mxu0 0.0
      %991 = vmatpush1.msra.mxu0 0.0
      %992 = vmatprep.subr.mxu0 0.0
      %993 = vmatpush1.msra.mxu0 0.0
      %994 = vmatprep.subr.mxu0 0.0
      %995 = vmatpush1.msra.mxu0 0.0
      %996 = vmatprep.subr.mxu0 0.0
      %997 = vmatpush1.msra.mxu0 0.0
      %998 = vmatprep.subr.mxu0 0.0
      %999 = vmatpush1.msra.mxu0 0.0
      %1000 = vmatprep.subr.mxu0 0.0
      %1001 = vmatpush1.msra.mxu0 0.0
      %1002 = vmatprep.subr.mxu0 0.0
      %1003 = vmatpush1.msra.mxu0 0.0
      %1004 = vmatprep.subr.mxu0 0.0
      %1005 = vmatpush1.msra.mxu0 0.0
      %1006 = vmatprep.subr.mxu0 0.0
      %1007 = vmatpush1.msra.mxu0 0.0
      %1008 = vmatprep.subr.mxu0 0.0
      %1009 = vmatpush1.msra.mxu0 0.0
      %1010 = vmatprep.subr.mxu0 0.0
      %1011 = vmatpush1.msra.mxu0 0.0
      %1012 = vmatprep.subr.mxu0 0.0
      %1013 = vmatpush1.msra.mxu0 0.0
      %1014 = vmatprep.subr.mxu0 0.0
      %1015 = vmatpush1.msra.mxu0 0.0
      %1016 = vmatprep.subr.mxu0 0.0
      %1017 = vmatpush1.msra.mxu0 0.0
      %1018 = vmatprep.subr.mxu0 0.0
      %1019 = vmatpush1.msra.mxu0 0.0
      %1020 = vmatprep.subr.mxu0 0.0
      %1021 = vmatpush1.msra.mxu0 0.0
      %1022 = vmatprep.subr.mxu0 0.0
      %1023 = vmatpush1.msra.mxu0 0.0
      %1024 = vmatprep.subr.mxu0 0.0
      %1025 = vmatpush1.msra.mxu0 0.0
      %1026 = vmatprep.subr.mxu0 0.0
      %1027 = vmatpush1.msra.mxu0 0.0
      %1028 = vmatprep.subr.mxu0 0.0
      %1029 = vmatpush1.msra.mxu0 0.0
      %1030 = vmatprep.subr.mxu0 0.0
      %1031 = vmatpush1.msra.mxu0 0.0
      %1032 = vmatprep.mubr.f32.mxu0 0.0
      %1033 = vmatmul.mubr.f32.gmra.mrb[0].mxu0 %v966
      %v1034 = vpop.f32.mrb[0].mxu0
      %v1035 = vadd.f32 0.0, %v1034
      %v1036 = vpop.f32.mrb[0].mxu0
      %1037 = vdwg.mxu0
      %v1039 = vsel %vm453, %v221, 0
      %1041 = vmatprep.subr.mxu0 0.0
      %1042 = vmatpush1.msra.mxu0 %v301
      %1043 = vmatprep.subr.mxu0 0.0
      %1044 = vmatpush1.msra.mxu0 %v302
      %1045 = vmatprep.subr.mxu0 0.0
      %1046 = vmatpush1.msra.mxu0 %v303
      %1047 = vmatprep.subr.mxu0 0.0
      %1048 = vmatpush1.msra.mxu0 %v304
      %1049 = vmatprep.subr.mxu0 0.0
      %1050 = vmatpush1.msra.mxu0 %v305
      %1051 = vmatprep.subr.mxu0 0.0
      %1052 = vmatpush1.msra.mxu0 %v306
      %1053 = vmatprep.subr.mxu0 0.0
      %1054 = vmatpush1.msra.mxu0 %v307
      %1055 = vmatprep.subr.mxu0 0.0
      %1056 = vmatpush1.msra.mxu0 %v308
      %1057 = vmatprep.subr.mxu0 0.0
      %1058 = vmatpush1.msra.mxu0 0.0
      %1059 = vmatprep.subr.mxu0 0.0
      %1060 = vmatpush1.msra.mxu0 0.0
      %1061 = vmatprep.subr.mxu0 0.0
      %1062 = vmatpush1.msra.mxu0 0.0
      %1063 = vmatprep.subr.mxu0 0.0
      %1064 = vmatpush1.msra.mxu0 0.0
      %1065 = vmatprep.subr.mxu0 0.0
      %1066 = vmatpush1.msra.mxu0 0.0
      %1067 = vmatprep.subr.mxu0 0.0
      %1068 = vmatpush1.msra.mxu0 0.0
      %1069 = vmatprep.subr.mxu0 0.0
      %1070 = vmatpush1.msra.mxu0 0.0
      %1071 = vmatprep.subr.mxu0 0.0
      %1072 = vmatpush1.msra.mxu0 0.0
      %1073 = vmatprep.subr.mxu0 0.0
      %1074 = vmatpush1.msra.mxu0 0.0
      %1075 = vmatprep.subr.mxu0 0.0
      %1076 = vmatpush1.msra.mxu0 0.0
      %1077 = vmatprep.subr.mxu0 0.0
      %1078 = vmatpush1.msra.mxu0 0.0
      %1079 = vmatprep.subr.mxu0 0.0
      %1080 = vmatpush1.msra.mxu0 0.0
      %1081 = vmatprep.subr.mxu0 0.0
      %1082 = vmatpush1.msra.mxu0 0.0
      %1083 = vmatprep.subr.mxu0 0.0
      %1084 = vmatpush1.msra.mxu0 0.0
      %1085 = vmatprep.subr.mxu0 0.0
      %1086 = vmatpush1.msra.mxu0 0.0
      %1087 = vmatprep.subr.mxu0 0.0
      %1088 = vmatpush1.msra.mxu0 0.0
      %1089 = vmatprep.subr.mxu0 0.0
      %1090 = vmatpush1.msra.mxu0 0.0
      %1091 = vmatprep.subr.mxu0 0.0
      %1092 = vmatpush1.msra.mxu0 0.0
      %1093 = vmatprep.subr.mxu0 0.0
      %1094 = vmatpush1.msra.mxu0 0.0
      %1095 = vmatprep.subr.mxu0 0.0
      %1096 = vmatpush1.msra.mxu0 0.0
      %1097 = vmatprep.subr.mxu0 0.0
      %1098 = vmatpush1.msra.mxu0 0.0
      %1099 = vmatprep.subr.mxu0 0.0
      %1100 = vmatpush1.msra.mxu0 0.0
      %1101 = vmatprep.subr.mxu0 0.0
      %1102 = vmatpush1.msra.mxu0 0.0
      %1103 = vmatprep.subr.mxu0 0.0
      %1104 = vmatpush1.msra.mxu0 0.0
      %1105 = vmatprep.mubr.f32.mxu0 0.0
      %1106 = vmatmul.mubr.f32.gmra.mrb[0].mxu0 %v1039
      %v1107 = vpop.f32.mrb[0].mxu0
      %v1108 = vadd.f32 0.0, %v1107
      %v1109 = vpop.f32.mrb[0].mxu0
      %1110 = vdwg.mxu0
      %v1112 = vsel %vm453, %v222, 0
      %1114 = vmatprep.subr.mxu0 0.0
      %1115 = vmatpush1.msra.mxu0 %v309
      %1116 = vmatprep.subr.mxu0 0.0
      %1117 = vmatpush1.msra.mxu0 %v310
      %1118 = vmatprep.subr.mxu0 0.0
      %1119 = vmatpush1.msra.mxu0 %v311
      %1120 = vmatprep.subr.mxu0 0.0
      %1121 = vmatpush1.msra.mxu0 %v312
      %1122 = vmatprep.subr.mxu0 0.0
      %1123 = vmatpush1.msra.mxu0 %v313
      %1124 = vmatprep.subr.mxu0 0.0
      %1125 = vmatpush1.msra.mxu0 %v314
      %1126 = vmatprep.subr.mxu0 0.0
      %1127 = vmatpush1.msra.mxu0 %v315
      %1128 = vmatprep.subr.mxu0 0.0
      %1129 = vmatpush1.msra.mxu0 %v316
      %1130 = vmatprep.subr.mxu0 0.0
      %1131 = vmatpush1.msra.mxu0 0.0
      %1132 = vmatprep.subr.mxu0 0.0
      %1133 = vmatpush1.msra.mxu0 0.0
      %1134 = vmatprep.subr.mxu0 0.0
      %1135 = vmatpush1.msra.mxu0 0.0
      %1136 = vmatprep.subr.mxu0 0.0
      %1137 = vmatpush1.msra.mxu0 0.0
      %1138 = vmatprep.subr.mxu0 0.0
      %1139 = vmatpush1.msra.mxu0 0.0
      %1140 = vmatprep.subr.mxu0 0.0
      %1141 = vmatpush1.msra.mxu0 0.0
      %1142 = vmatprep.subr.mxu0 0.0
      %1143 = vmatpush1.msra.mxu0 0.0
      %1144 = vmatprep.subr.mxu0 0.0
      %1145 = vmatpush1.msra.mxu0 0.0
      %1146 = vmatprep.subr.mxu0 0.0
      %1147 = vmatpush1.msra.mxu0 0.0
      %1148 = vmatprep.subr.mxu0 0.0
      %1149 = vmatpush1.msra.mxu0 0.0
      %1150 = vmatprep.subr.mxu0 0.0
      %1151 = vmatpush1.msra.mxu0 0.0
      %1152 = vmatprep.subr.mxu0 0.0
      %1153 = vmatpush1.msra.mxu0 0.0
      %1154 = vmatprep.subr.mxu0 0.0
      %1155 = vmatpush1.msra.mxu0 0.0
      %1156 = vmatprep.subr.mxu0 0.0
      %1157 = vmatpush1.msra.mxu0 0.0
      %1158 = vmatprep.subr.mxu0 0.0
      %1159 = vmatpush1.msra.mxu0 0.0
      %1160 = vmatprep.subr.mxu0 0.0
      %1161 = vmatpush1.msra.mxu0 0.0
      %1162 = vmatprep.subr.mxu0 0.0
      %1163 = vmatpush1.msra.mxu0 0.0
      %1164 = vmatprep.subr.mxu0 0.0
      %1165 = vmatpush1.msra.mxu0 0.0
      %1166 = vmatprep.subr.mxu0 0.0
      %1167 = vmatpush1.msra.mxu0 0.0
      %1168 = vmatprep.subr.mxu0 0.0
      %1169 = vmatpush1.msra.mxu0 0.0
      %1170 = vmatprep.subr.mxu0 0.0
      %1171 = vmatpush1.msra.mxu0 0.0
      %1172 = vmatprep.subr.mxu0 0.0
      %1173 = vmatpush1.msra.mxu0 0.0
      %1174 = vmatprep.subr.mxu0 0.0
      %1175 = vmatpush1.msra.mxu0 0.0
      %1176 = vmatprep.subr.mxu0 0.0
      %1177 = vmatpush1.msra.mxu0 0.0
      %1178 = vmatprep.mubr.f32.mxu0 0.0
      %1179 = vmatmul.mubr.f32.gmra.mrb[0].mxu0 %v1112
      %v1180 = vpop.f32.mrb[0].mxu0
      %v1181 = vadd.f32 0.0, %v1180
      %v1182 = vpop.f32.mrb[0].mxu0
      %1183 = vdwg.mxu0
      %v1185 = vsel %vm453, %v223, 0
      %1187 = vmatprep.subr.mxu0 0.0
      %1188 = vmatpush1.msra.mxu0 %v317
      %1189 = vmatprep.subr.mxu0 0.0
      %1190 = vmatpush1.msra.mxu0 %v318
      %1191 = vmatprep.subr.mxu0 0.0
      %1192 = vmatpush1.msra.mxu0 %v319
      %1193 = vmatprep.subr.mxu0 0.0
      %1194 = vmatpush1.msra.mxu0 %v320
      %1195 = vmatprep.subr.mxu0 0.0
      %1196 = vmatpush1.msra.mxu0 %v321
      %1197 = vmatprep.subr.mxu0 0.0
      %1198 = vmatpush1.msra.mxu0 %v322
      %1199 = vmatprep.subr.mxu0 0.0
      %1200 = vmatpush1.msra.mxu0 %v323
      %1201 = vmatprep.subr.mxu0 0.0
      %1202 = vmatpush1.msra.mxu0 %v324
      %1203 = vmatprep.subr.mxu0 0.0
      %1204 = vmatpush1.msra.mxu0 0.0
      %1205 = vmatprep.subr.mxu0 0.0
      %1206 = vmatpush1.msra.mxu0 0.0
      %1207 = vmatprep.subr.mxu0 0.0
      %1208 = vmatpush1.msra.mxu0 0.0
      %1209 = vmatprep.subr.mxu0 0.0
      %1210 = vmatpush1.msra.mxu0 0.0
      %1211 = vmatprep.subr.mxu0 0.0
      %1212 = vmatpush1.msra.mxu0 0.0
      %1213 = vmatprep.subr.mxu0 0.0
      %1214 = vmatpush1.msra.mxu0 0.0
      %1215 = vmatprep.subr.mxu0 0.0
      %1216 = vmatpush1.msra.mxu0 0.0
      %1217 = vmatprep.subr.mxu0 0.0
      %1218 = vmatpush1.msra.mxu0 0.0
      %1219 = vmatprep.subr.mxu0 0.0
      %1220 = vmatpush1.msra.mxu0 0.0
      %1221 = vmatprep.subr.mxu0 0.0
      %1222 = vmatpush1.msra.mxu0 0.0
      %1223 = vmatprep.subr.mxu0 0.0
      %1224 = vmatpush1.msra.mxu0 0.0
      %1225 = vmatprep.subr.mxu0 0.0
      %1226 = vmatpush1.msra.mxu0 0.0
      %1227 = vmatprep.subr.mxu0 0.0
      %1228 = vmatpush1.msra.mxu0 0.0
      %1229 = vmatprep.subr.mxu0 0.0
      %1230 = vmatpush1.msra.mxu0 0.0
      %1231 = vmatprep.subr.mxu0 0.0
      %1232 = vmatpush1.msra.mxu0 0.0
      %1233 = vmatprep.subr.mxu0 0.0
      %1234 = vmatpush1.msra.mxu0 0.0
      %1235 = vmatprep.subr.mxu0 0.0
      %1236 = vmatpush1.msra.mxu0 0.0
      %1237 = vmatprep.subr.mxu0 0.0
      %1238 = vmatpush1.msra.mxu0 0.0
      %1239 = vmatprep.subr.mxu0 0.0
      %1240 = vmatpush1.msra.mxu0 0.0
      %1241 = vmatprep.subr.mxu0 0.0
      %1242 = vmatpush1.msra.mxu0 0.0
      %1243 = vmatprep.subr.mxu0 0.0
      %1244 = vmatpush1.msra.mxu0 0.0
      %1245 = vmatprep.subr.mxu0 0.0
      %1246 = vmatpush1.msra.mxu0 0.0
      %1247 = vmatprep.subr.mxu0 0.0
      %1248 = vmatpush1.msra.mxu0 0.0
      %1249 = vmatprep.subr.mxu0 0.0
      %1250 = vmatpush1.msra.mxu0 0.0
      %1251 = vmatprep.mubr.f32.mxu0 0.0
      %1252 = vmatmul.mubr.f32.gmra.mrb[0].mxu0 %v1185
      %v1253 = vpop.f32.mrb[0].mxu0
      %v1254 = vadd.f32 0.0, %v1253
      %v1255 = vpop.f32.mrb[0].mxu0
      %1256 = vdwg.mxu0
      %v1258 = vsel %vm453, %v224, 0
      %1260 = vmatprep.subr.mxu0 0.0
      %1261 = vmatpush1.msra.mxu0 %v325
      %1262 = vmatprep.subr.mxu0 0.0
      %1263 = vmatpush1.msra.mxu0 %v326
      %1264 = vmatprep.subr.mxu0 0.0
      %1265 = vmatpush1.msra.mxu0 %v327
      %1266 = vmatprep.subr.mxu0 0.0
      %1267 = vmatpush1.msra.mxu0 %v328
      %1268 = vmatprep.subr.mxu0 0.0
      %1269 = vmatpush1.msra.mxu0 %v329
      %1270 = vmatprep.subr.mxu0 0.0
      %1271 = vmatpush1.msra.mxu0 %v330
      %1272 = vmatprep.subr.mxu0 0.0
      %1273 = vmatpush1.msra.mxu0 %v331
      %1274 = vmatprep.subr.mxu0 0.0
      %1275 = vmatpush1.msra.mxu0 %v332
      %1276 = vmatprep.subr.mxu0 0.0
      %1277 = vmatpush1.msra.mxu0 0.0
      %1278 = vmatprep.subr.mxu0 0.0
      %1279 = vmatpush1.msra.mxu0 0.0
      %1280 = vmatprep.subr.mxu0 0.0
      %1281 = vmatpush1.msra.mxu0 0.0
      %1282 = vmatprep.subr.mxu0 0.0
      %1283 = vmatpush1.msra.mxu0 0.0
      %1284 = vmatprep.subr.mxu0 0.0
      %1285 = vmatpush1.msra.mxu0 0.0
      %1286 = vmatprep.subr.mxu0 0.0
      %1287 = vmatpush1.msra.mxu0 0.0
      %1288 = vmatprep.subr.mxu0 0.0
      %1289 = vmatpush1.msra.mxu0 0.0
      %1290 = vmatprep.subr.mxu0 0.0
      %1291 = vmatpush1.msra.mxu0 0.0
      %1292 = vmatprep.subr.mxu0 0.0
      %1293 = vmatpush1.msra.mxu0 0.0
      %1294 = vmatprep.subr.mxu0 0.0
      %1295 = vmatpush1.msra.mxu0 0.0
      %1296 = vmatprep.subr.mxu0 0.0
      %1297 = vmatpush1.msra.mxu0 0.0
      %1298 = vmatprep.subr.mxu0 0.0
      %1299 = vmatpush1.msra.mxu0 0.0
      %1300 = vmatprep.subr.mxu0 0.0
      %1301 = vmatpush1.msra.mxu0 0.0
      %1302 = vmatprep.subr.mxu0 0.0
      %1303 = vmatpush1.msra.mxu0 0.0
      %1304 = vmatprep.subr.mxu0 0.0
      %1305 = vmatpush1.msra.mxu0 0.0
      %1306 = vmatprep.subr.mxu0 0.0
      %1307 = vmatpush1.msra.mxu0 0.0
      %1308 = vmatprep.subr.mxu0 0.0
      %1309 = vmatpush1.msra.mxu0 0.0
      %1310 = vmatprep.subr.mxu0 0.0
      %1311 = vmatpush1.msra.mxu0 0.0
      %1312 = vmatprep.subr.mxu0 0.0
      %1313 = vmatpush1.msra.mxu0 0.0
      %1314 = vmatprep.subr.mxu0 0.0
      %1315 = vmatpush1.msra.mxu0 0.0
      %1316 = vmatprep.subr.mxu0 0.0
      %1317 = vmatpush1.msra.mxu0 0.0
      %1318 = vmatprep.subr.mxu0 0.0
      %1319 = vmatpush1.msra.mxu0 0.0
      %1320 = vmatprep.subr.mxu0 0.0
      %1321 = vmatpush1.msra.mxu0 0.0
      %1322 = vmatprep.subr.mxu0 0.0
      %1323 = vmatpush1.msra.mxu0 0.0
      %1324 = vmatprep.mubr.f32.mxu0 0.0
      %1325 = vmatmul.mubr.f32.gmra.mrb[0].mxu0 %v1258
      %v1326 = vpop.f32.mrb[0].mxu0
      %v1327 = vadd.f32 0.0, %v1326
      %v1328 = vpop.f32.mrb[0].mxu0
      %1329 = vdwg.mxu0
      %v1331 = vsel %vm453, %v225, 0
      %1333 = vmatprep.subr.mxu0 0.0
      %1334 = vmatpush1.msra.mxu0 %v333
      %1335 = vmatprep.subr.mxu0 0.0
      %1336 = vmatpush1.msra.mxu0 %v334
      %1337 = vmatprep.subr.mxu0 0.0
      %1338 = vmatpush1.msra.mxu0 %v335
      %1339 = vmatprep.subr.mxu0 0.0
      %1340 = vmatpush1.msra.mxu0 %v336
      %1341 = vmatprep.subr.mxu0 0.0
      %1342 = vmatpush1.msra.mxu0 %v337
      %1343 = vmatprep.subr.mxu0 0.0
      %1344 = vmatpush1.msra.mxu0 %v338
      %1345 = vmatprep.subr.mxu0 0.0
      %1346 = vmatpush1.msra.mxu0 %v339
      %1347 = vmatprep.subr.mxu0 0.0
      %1348 = vmatpush1.msra.mxu0 %v340
      %1349 = vmatprep.subr.mxu0 0.0
      %1350 = vmatpush1.msra.mxu0 0.0
      %1351 = vmatprep.subr.mxu0 0.0
      %1352 = vmatpush1.msra.mxu0 0.0
      %1353 = vmatprep.subr.mxu0 0.0
      %1354 = vmatpush1.msra.mxu0 0.0
      %1355 = vmatprep.subr.mxu0 0.0
      %1356 = vmatpush1.msra.mxu0 0.0
      %1357 = vmatprep.subr.mxu0 0.0
      %1358 = vmatpush1.msra.mxu0 0.0
      %1359 = vmatprep.subr.mxu0 0.0
      %1360 = vmatpush1.msra.mxu0 0.0
      %1361 = vmatprep.subr.mxu0 0.0
      %1362 = vmatpush1.msra.mxu0 0.0
      %1363 = vmatprep.subr.mxu0 0.0
      %1364 = vmatpush1.msra.mxu0 0.0
      %1365 = vmatprep.subr.mxu0 0.0
      %1366 = vmatpush1.msra.mxu0 0.0
      %1367 = vmatprep.subr.mxu0 0.0
      %1368 = vmatpush1.msra.mxu0 0.0
      %1369 = vmatprep.subr.mxu0 0.0
      %1370 = vmatpush1.msra.mxu0 0.0
      %1371 = vmatprep.subr.mxu0 0.0
      %1372 = vmatpush1.msra.mxu0 0.0
      %1373 = vmatprep.subr.mxu0 0.0
      %1374 = vmatpush1.msra.mxu0 0.0
      %1375 = vmatprep.subr.mxu0 0.0
      %1376 = vmatpush1.msra.mxu0 0.0
      %1377 = vmatprep.subr.mxu0 0.0
      %1378 = vmatpush1.msra.mxu0 0.0
      %1379 = vmatprep.subr.mxu0 0.0
      %1380 = vmatpush1.msra.mxu0 0.0
      %1381 = vmatprep.subr.mxu0 0.0
      %1382 = vmatpush1.msra.mxu0 0.0
      %1383 = vmatprep.subr.mxu0 0.0
      %1384 = vmatpush1.msra.mxu0 0.0
      %1385 = vmatprep.subr.mxu0 0.0
      %1386 = vmatpush1.msra.mxu0 0.0
      %1387 = vmatprep.subr.mxu0 0.0
      %1388 = vmatpush1.msra.mxu0 0.0
      %1389 = vmatprep.subr.mxu0 0.0
      %1390 = vmatpush1.msra.mxu0 0.0
      %1391 = vmatprep.subr.mxu0 0.0
      %1392 = vmatpush1.msra.mxu0 0.0
      %1393 = vmatprep.subr.mxu0 0.0
      %1394 = vmatpush1.msra.mxu0 0.0
      %1395 = vmatprep.subr.mxu0 0.0
      %1396 = vmatpush1.msra.mxu0 0.0
      %1397 = vmatprep.mubr.f32.mxu0 0.0
      %1398 = vmatmul.mubr.f32.gmra.mrb[0].mxu0 %v1331
      %v1399 = vpop.f32.mrb[0].mxu0
      %v1400 = vadd.f32 0.0, %v1399
      %v1401 = vpop.f32.mrb[0].mxu0
      %1402 = vdwg.mxu0
      %v1404 = vsel %vm453, %v226, 0
      %1406 = vmatprep.subr.mxu0 0.0
      %1407 = vmatpush1.msra.mxu0 %v341
      %1408 = vmatprep.subr.mxu0 0.0
      %1409 = vmatpush1.msra.mxu0 %v342
      %1410 = vmatprep.subr.mxu0 0.0
      %1411 = vmatpush1.msra.mxu0 %v343
      %1412 = vmatprep.subr.mxu0 0.0
      %1413 = vmatpush1.msra.mxu0 %v344
      %1414 = vmatprep.subr.mxu0 0.0
      %1415 = vmatpush1.msra.mxu0 %v345
      %1416 = vmatprep.subr.mxu0 0.0
      %1417 = vmatpush1.msra.mxu0 %v346
      %1418 = vmatprep.subr.mxu0 0.0
      %1419 = vmatpush1.msra.mxu0 %v347
      %1420 = vmatprep.subr.mxu0 0.0
      %1421 = vmatpush1.msra.mxu0 %v348
      %1422 = vmatprep.subr.mxu0 0.0
      %1423 = vmatpush1.msra.mxu0 0.0
      %1424 = vmatprep.subr.mxu0 0.0
      %1425 = vmatpush1.msra.mxu0 0.0
      %1426 = vmatprep.subr.mxu0 0.0
      %1427 = vmatpush1.msra.mxu0 0.0
      %1428 = vmatprep.subr.mxu0 0.0
      %1429 = vmatpush1.msra.mxu0 0.0
      %1430 = vmatprep.subr.mxu0 0.0
      %1431 = vmatpush1.msra.mxu0 0.0
      %1432 = vmatprep.subr.mxu0 0.0
      %1433 = vmatpush1.msra.mxu0 0.0
      %1434 = vmatprep.subr.mxu0 0.0
      %1435 = vmatpush1.msra.mxu0 0.0
      %1436 = vmatprep.subr.mxu0 0.0
      %1437 = vmatpush1.msra.mxu0 0.0
      %1438 = vmatprep.subr.mxu0 0.0
      %1439 = vmatpush1.msra.mxu0 0.0
      %1440 = vmatprep.subr.mxu0 0.0
      %1441 = vmatpush1.msra.mxu0 0.0
      %1442 = vmatprep.subr.mxu0 0.0
      %1443 = vmatpush1.msra.mxu0 0.0
      %1444 = vmatprep.subr.mxu0 0.0
      %1445 = vmatpush1.msra.mxu0 0.0
      %1446 = vmatprep.subr.mxu0 0.0
      %1447 = vmatpush1.msra.mxu0 0.0
      %1448 = vmatprep.subr.mxu0 0.0
      %1449 = vmatpush1.msra.mxu0 0.0
      %1450 = vmatprep.subr.mxu0 0.0
      %1451 = vmatpush1.msra.mxu0 0.0
      %1452 = vmatprep.subr.mxu0 0.0
      %1453 = vmatpush1.msra.mxu0 0.0
      %1454 = vmatprep.subr.mxu0 0.0
      %1455 = vmatpush1.msra.mxu0 0.0
      %1456 = vmatprep.subr.mxu0 0.0
      %1457 = vmatpush1.msra.mxu0 0.0
      %1458 = vmatprep.subr.mxu0 0.0
      %1459 = vmatpush1.msra.mxu0 0.0
      %1460 = vmatprep.subr.mxu0 0.0
      %1461 = vmatpush1.msra.mxu0 0.0
      %1462 = vmatprep.subr.mxu0 0.0
      %1463 = vmatpush1.msra.mxu0 0.0
      %1464 = vmatprep.subr.mxu0 0.0
      %1465 = vmatpush1.msra.mxu0 0.0
      %1466 = vmatprep.subr.mxu0 0.0
      %1467 = vmatpush1.msra.mxu0 0.0
      %1468 = vmatprep.subr.mxu0 0.0
      %1469 = vmatpush1.msra.mxu0 0.0
      %1470 = vmatprep.mubr.f32.mxu0 0.0
      %1471 = vmatmul.mubr.f32.gmra.mrb[0].mxu0 %v1404
      %v1472 = vpop.f32.mrb[0].mxu0
      %v1473 = vadd.f32 0.0, %v1472
      %v1474 = vpop.f32.mrb[0].mxu0
      %1475 = vdwg.mxu0
      %v1477 = vsel %vm453, %v227, 0
      %1479 = vmatprep.subr.mxu0 0.0
      %1480 = vmatpush1.msra.mxu0 %v349
      %1481 = vmatprep.subr.mxu0 0.0
      %1482 = vmatpush1.msra.mxu0 %v350
      %1483 = vmatprep.subr.mxu0 0.0
      %1484 = vmatpush1.msra.mxu0 %v351
      %1485 = vmatprep.subr.mxu0 0.0
      %1486 = vmatpush1.msra.mxu0 %v352
      %1487 = vmatprep.subr.mxu0 0.0
      %1488 = vmatpush1.msra.mxu0 %v353
      %1489 = vmatprep.subr.mxu0 0.0
      %1490 = vmatpush1.msra.mxu0 %v354
      %1491 = vmatprep.subr.mxu0 0.0
      %1492 = vmatpush1.msra.mxu0 %v355
      %1493 = vmatprep.subr.mxu0 0.0
      %1494 = vmatpush1.msra.mxu0 %v356
      %1495 = vmatprep.subr.mxu0 0.0
      %1496 = vmatpush1.msra.mxu0 0.0
      %1497 = vmatprep.subr.mxu0 0.0
      %1498 = vmatpush1.msra.mxu0 0.0
      %1499 = vmatprep.subr.mxu0 0.0
      %1500 = vmatpush1.msra.mxu0 0.0
      %1501 = vmatprep.subr.mxu0 0.0
      %1502 = vmatpush1.msra.mxu0 0.0
      %1503 = vmatprep.subr.mxu0 0.0
      %1504 = vmatpush1.msra.mxu0 0.0
      %1505 = vmatprep.subr.mxu0 0.0
      %1506 = vmatpush1.msra.mxu0 0.0
      %1507 = vmatprep.subr.mxu0 0.0
      %1508 = vmatpush1.msra.mxu0 0.0
      %1509 = vmatprep.subr.mxu0 0.0
      %1510 = vmatpush1.msra.mxu0 0.0
      %1511 = vmatprep.subr.mxu0 0.0
      %1512 = vmatpush1.msra.mxu0 0.0
      %1513 = vmatprep.subr.mxu0 0.0
      %1514 = vmatpush1.msra.mxu0 0.0
      %1515 = vmatprep.subr.mxu0 0.0
      %1516 = vmatpush1.msra.mxu0 0.0
      %1517 = vmatprep.subr.mxu0 0.0
      %1518 = vmatpush1.msra.mxu0 0.0
      %1519 = vmatprep.subr.mxu0 0.0
      %1520 = vmatpush1.msra.mxu0 0.0
      %1521 = vmatprep.subr.mxu0 0.0
      %1522 = vmatpush1.msra.mxu0 0.0
      %1523 = vmatprep.subr.mxu0 0.0
      %1524 = vmatpush1.msra.mxu0 0.0
      %1525 = vmatprep.subr.mxu0 0.0
      %1526 = vmatpush1.msra.mxu0 0.0
      %1527 = vmatprep.subr.mxu0 0.0
      %1528 = vmatpush1.msra.mxu0 0.0
      %1529 = vmatprep.subr.mxu0 0.0
      %1530 = vmatpush1.msra.mxu0 0.0
      %1531 = vmatprep.subr.mxu0 0.0
      %1532 = vmatpush1.msra.mxu0 0.0
      %1533 = vmatprep.subr.mxu0 0.0
      %1534 = vmatpush1.msra.mxu0 0.0
      %1535 = vmatprep.subr.mxu0 0.0
      %1536 = vmatpush1.msra.mxu0 0.0
      %1537 = vmatprep.subr.mxu0 0.0
      %1538 = vmatpush1.msra.mxu0 0.0
      %1539 = vmatprep.subr.mxu0 0.0
      %1540 = vmatpush1.msra.mxu0 0.0
      %1541 = vmatprep.subr.mxu0 0.0
      %1542 = vmatpush1.msra.mxu0 0.0
      %1543 = vmatprep.mubr.f32.mxu0 0.0
      %1544 = vmatmul.mubr.f32.gmra.mrb[0].mxu0 %v1477
      %v1545 = vpop.f32.mrb[0].mxu0
      %v1546 = vadd.f32 0.0, %v1545
      %v1547 = vpop.f32.mrb[0].mxu0
      %1548 = vdwg.mxu0
      %v1550 = vsel %vm453, %v228, 0
      %1552 = vmatprep.subr.mxu0 0.0
      %1553 = vmatpush1.msra.mxu0 %v357
      %1554 = vmatprep.subr.mxu0 0.0
      %1555 = vmatpush1.msra.mxu0 %v358
      %1556 = vmatprep.subr.mxu0 0.0
      %1557 = vmatpush1.msra.mxu0 %v359
      %1558 = vmatprep.subr.mxu0 0.0
      %1559 = vmatpush1.msra.mxu0 %v360
      %1560 = vmatprep.subr.mxu0 0.0
      %1561 = vmatpush1.msra.mxu0 %v361
      %1562 = vmatprep.subr.mxu0 0.0
      %1563 = vmatpush1.msra.mxu0 %v362
      %1564 = vmatprep.subr.mxu0 0.0
      %1565 = vmatpush1.msra.mxu0 %v363
      %1566 = vmatprep.subr.mxu0 0.0
      %1567 = vmatpush1.msra.mxu0 %v364
      %1568 = vmatprep.subr.mxu0 0.0
      %1569 = vmatpush1.msra.mxu0 0.0
      %1570 = vmatprep.subr.mxu0 0.0
      %1571 = vmatpush1.msra.mxu0 0.0
      %1572 = vmatprep.subr.mxu0 0.0
      %1573 = vmatpush1.msra.mxu0 0.0
      %1574 = vmatprep.subr.mxu0 0.0
      %1575 = vmatpush1.msra.mxu0 0.0
      %1576 = vmatprep.subr.mxu0 0.0
      %1577 = vmatpush1.msra.mxu0 0.0
      %1578 = vmatprep.subr.mxu0 0.0
      %1579 = vmatpush1.msra.mxu0 0.0
      %1580 = vmatprep.subr.mxu0 0.0
      %1581 = vmatpush1.msra.mxu0 0.0
      %1582 = vmatprep.subr.mxu0 0.0
      %1583 = vmatpush1.msra.mxu0 0.0
      %1584 = vmatprep.subr.mxu0 0.0
      %1585 = vmatpush1.msra.mxu0 0.0
      %1586 = vmatprep.subr.mxu0 0.0
      %1587 = vmatpush1.msra.mxu0 0.0
      %1588 = vmatprep.subr.mxu0 0.0
      %1589 = vmatpush1.msra.mxu0 0.0
      %1590 = vmatprep.subr.mxu0 0.0
      %1591 = vmatpush1.msra.mxu0 0.0
      %1592 = vmatprep.subr.mxu0 0.0
      %1593 = vmatpush1.msra.mxu0 0.0
      %1594 = vmatprep.subr.mxu0 0.0
      %1595 = vmatpush1.msra.mxu0 0.0
      %1596 = vmatprep.subr.mxu0 0.0
      %1597 = vmatpush1.msra.mxu0 0.0
      %1598 = vmatprep.subr.mxu0 0.0
      %1599 = vmatpush1.msra.mxu0 0.0
      %1600 = vmatprep.subr.mxu0 0.0
      %1601 = vmatpush1.msra.mxu0 0.0
      %1602 = vmatprep.subr.mxu0 0.0
      %1603 = vmatpush1.msra.mxu0 0.0
      %1604 = vmatprep.subr.mxu0 0.0
      %1605 = vmatpush1.msra.mxu0 0.0
      %1606 = vmatprep.subr.mxu0 0.0
      %1607 = vmatpush1.msra.mxu0 0.0
      %1608 = vmatprep.subr.mxu0 0.0
      %1609 = vmatpush1.msra.mxu0 0.0
      %1610 = vmatprep.subr.mxu0 0.0
      %1611 = vmatpush1.msra.mxu0 0.0
      %1612 = vmatprep.subr.mxu0 0.0
      %1613 = vmatpush1.msra.mxu0 0.0
      %1614 = vmatprep.subr.mxu0 0.0
      %1615 = vmatpush1.msra.mxu0 0.0
      %1616 = vmatprep.mubr.f32.mxu0 0.0
      %1617 = vmatmul.mubr.f32.gmra.mrb[0].mxu0 %v1550
      %v1618 = vpop.f32.mrb[0].mxu0
      %v1619 = vadd.f32 0.0, %v1618
      %v1620 = vpop.f32.mrb[0].mxu0
      %1621 = vdwg.mxu0
      %v1623 = vsel %vm453, %v229, 0
      %1625 = vmatprep.subr.mxu0 0.0
      %1626 = vmatpush1.msra.mxu0 %v365
      %1627 = vmatprep.subr.mxu0 0.0
      %1628 = vmatpush1.msra.mxu0 %v366
      %1629 = vmatprep.subr.mxu0 0.0
      %1630 = vmatpush1.msra.mxu0 %v367
      %1631 = vmatprep.subr.mxu0 0.0
      %1632 = vmatpush1.msra.mxu0 %v368
      %1633 = vmatprep.subr.mxu0 0.0
      %1634 = vmatpush1.msra.mxu0 %v369
      %1635 = vmatprep.subr.mxu0 0.0
      %1636 = vmatpush1.msra.mxu0 %v370
      %1637 = vmatprep.subr.mxu0 0.0
      %1638 = vmatpush1.msra.mxu0 %v371
      %1639 = vmatprep.subr.mxu0 0.0
      %1640 = vmatpush1.msra.mxu0 %v372
      %1641 = vmatprep.subr.mxu0 0.0
      %1642 = vmatpush1.msra.mxu0 0.0
      %1643 = vmatprep.subr.mxu0 0.0
      %1644 = vmatpush1.msra.mxu0 0.0
      %1645 = vmatprep.subr.mxu0 0.0
      %1646 = vmatpush1.msra.mxu0 0.0
      %1647 = vmatprep.subr.mxu0 0.0
      %1648 = vmatpush1.msra.mxu0 0.0
      %1649 = vmatprep.subr.mxu0 0.0
      %1650 = vmatpush1.msra.mxu0 0.0
      %1651 = vmatprep.subr.mxu0 0.0
      %1652 = vmatpush1.msra.mxu0 0.0
      %1653 = vmatprep.subr.mxu0 0.0
      %1654 = vmatpush1.msra.mxu0 0.0
      %1655 = vmatprep.subr.mxu0 0.0
      %1656 = vmatpush1.msra.mxu0 0.0
      %1657 = vmatprep.subr.mxu0 0.0
      %1658 = vmatpush1.msra.mxu0 0.0
      %1659 = vmatprep.subr.mxu0 0.0
      %1660 = vmatpush1.msra.mxu0 0.0
      %1661 = vmatprep.subr.mxu0 0.0
      %1662 = vmatpush1.msra.mxu0 0.0
      %1663 = vmatprep.subr.mxu0 0.0
      %1664 = vmatpush1.msra.mxu0 0.0
      %1665 = vmatprep.subr.mxu0 0.0
      %1666 = vmatpush1.msra.mxu0 0.0
      %1667 = vmatprep.subr.mxu0 0.0
      %1668 = vmatpush1.msra.mxu0 0.0
      %1669 = vmatprep.subr.mxu0 0.0
      %1670 = vmatpush1.msra.mxu0 0.0
      %1671 = vmatprep.subr.mxu0 0.0
      %1672 = vmatpush1.msra.mxu0 0.0
      %1673 = vmatprep.subr.mxu0 0.0
      %1674 = vmatpush1.msra.mxu0 0.0
      %1675 = vmatprep.subr.mxu0 0.0
      %1676 = vmatpush1.msra.mxu0 0.0
      %1677 = vmatprep.subr.mxu0 0.0
      %1678 = vmatpush1.msra.mxu0 0.0
      %1679 = vmatprep.subr.mxu0 0.0
      %1680 = vmatpush1.msra.mxu0 0.0
      %1681 = vmatprep.subr.mxu0 0.0
      %1682 = vmatpush1.msra.mxu0 0.0
      %1683 = vmatprep.subr.mxu0 0.0
      %1684 = vmatpush1.msra.mxu0 0.0
      %1685 = vmatprep.subr.mxu0 0.0
      %1686 = vmatpush1.msra.mxu0 0.0
      %1687 = vmatprep.subr.mxu0 0.0
      %1688 = vmatpush1.msra.mxu0 0.0
      %1689 = vmatprep.mubr.f32.mxu0 0.0
      %1690 = vmatmul.mubr.f32.gmra.mrb[0].mxu0 %v1623
      %v1691 = vpop.f32.mrb[0].mxu0
      %v1692 = vadd.f32 0.0, %v1691
      %v1693 = vpop.f32.mrb[0].mxu0
      %1694 = vdwg.mxu0
      %v1696 = vsel %vm453, %v230, 0
      %1698 = vmatprep.subr.mxu0 0.0
      %1699 = vmatpush1.msra.mxu0 %v373
      %1700 = vmatprep.subr.mxu0 0.0
      %1701 = vmatpush1.msra.mxu0 %v374
      %1702 = vmatprep.subr.mxu0 0.0
      %1703 = vmatpush1.msra.mxu0 %v375
      %1704 = vmatprep.subr.mxu0 0.0
      %1705 = vmatpush1.msra.mxu0 %v376
      %1706 = vmatprep.subr.mxu0 0.0
      %1707 = vmatpush1.msra.mxu0 %v377
      %1708 = vmatprep.subr.mxu0 0.0
      %1709 = vmatpush1.msra.mxu0 %v378
      %1710 = vmatprep.subr.mxu0 0.0
      %1711 = vmatpush1.msra.mxu0 %v379
      %1712 = vmatprep.subr.mxu0 0.0
      %1713 = vmatpush1.msra.mxu0 %v380
      %1714 = vmatprep.subr.mxu0 0.0
      %1715 = vmatpush1.msra.mxu0 0.0
      %1716 = vmatprep.subr.mxu0 0.0
      %1717 = vmatpush1.msra.mxu0 0.0
      %1718 = vmatprep.subr.mxu0 0.0
      %1719 = vmatpush1.msra.mxu0 0.0
      %1720 = vmatprep.subr.mxu0 0.0
      %1721 = vmatpush1.msra.mxu0 0.0
      %1722 = vmatprep.subr.mxu0 0.0
      %1723 = vmatpush1.msra.mxu0 0.0
      %1724 = vmatprep.subr.mxu0 0.0
      %1725 = vmatpush1.msra.mxu0 0.0
      %1726 = vmatprep.subr.mxu0 0.0
      %1727 = vmatpush1.msra.mxu0 0.0
      %1728 = vmatprep.subr.mxu0 0.0
      %1729 = vmatpush1.msra.mxu0 0.0
      %1730 = vmatprep.subr.mxu0 0.0
      %1731 = vmatpush1.msra.mxu0 0.0
      %1732 = vmatprep.subr.mxu0 0.0
      %1733 = vmatpush1.msra.mxu0 0.0
      %1734 = vmatprep.subr.mxu0 0.0
      %1735 = vmatpush1.msra.mxu0 0.0
      %1736 = vmatprep.subr.mxu0 0.0
      %1737 = vmatpush1.msra.mxu0 0.0
      %1738 = vmatprep.subr.mxu0 0.0
      %1739 = vmatpush1.msra.mxu0 0.0
      %1740 = vmatprep.subr.mxu0 0.0
      %1741 = vmatpush1.msra.mxu0 0.0
      %1742 = vmatprep.subr.mxu0 0.0
      %1743 = vmatpush1.msra.mxu0 0.0
      %1744 = vmatprep.subr.mxu0 0.0
      %1745 = vmatpush1.msra.mxu0 0.0
      %1746 = vmatprep.subr.mxu0 0.0
      %1747 = vmatpush1.msra.mxu0 0.0
      %1748 = vmatprep.subr.mxu0 0.0
      %1749 = vmatpush1.msra.mxu0 0.0
      %1750 = vmatprep.subr.mxu0 0.0
      %1751 = vmatpush1.msra.mxu0 0.0
      %1752 = vmatprep.subr.mxu0 0.0
      %1753 = vmatpush1.msra.mxu0 0.0
      %1754 = vmatprep.subr.mxu0 0.0
      %1755 = vmatpush1.msra.mxu0 0.0
      %1756 = vmatprep.subr.mxu0 0.0
      %1757 = vmatpush1.msra.mxu0 0.0
      %1758 = vmatprep.subr.mxu0 0.0
      %1759 = vmatpush1.msra.mxu0 0.0
      %1760 = vmatprep.subr.mxu0 0.0
      %1761 = vmatpush1.msra.mxu0 0.0
      %1762 = vmatprep.mubr.f32.mxu0 0.0
      %1763 = vmatmul.mubr.f32.gmra.mrb[0].mxu0 %v1696
      %v1764 = vpop.f32.mrb[0].mxu0
      %v1765 = vadd.f32 0.0, %v1764
      %v1766 = vpop.f32.mrb[0].mxu0
      %1767 = vdwg.mxu0
      %v1769 = vsel %vm453, %v231, 0
      %1771 = vmatprep.subr.mxu0 0.0
      %1772 = vmatpush1.msra.mxu0 %v381
      %1773 = vmatprep.subr.mxu0 0.0
      %1774 = vmatpush1.msra.mxu0 %v382
      %1775 = vmatprep.subr.mxu0 0.0
      %1776 = vmatpush1.msra.mxu0 %v383
      %1777 = vmatprep.subr.mxu0 0.0
      %1778 = vmatpush1.msra.mxu0 %v384
      %1779 = vmatprep.subr.mxu0 0.0
      %1780 = vmatpush1.msra.mxu0 %v385
      %1781 = vmatprep.subr.mxu0 0.0
      %1782 = vmatpush1.msra.mxu0 %v386
      %1783 = vmatprep.subr.mxu0 0.0
      %1784 = vmatpush1.msra.mxu0 %v387
      %1785 = vmatprep.subr.mxu0 0.0
      %1786 = vmatpush1.msra.mxu0 %v388
      %1787 = vmatprep.subr.mxu0 0.0
      %1788 = vmatpush1.msra.mxu0 0.0
      %1789 = vmatprep.subr.mxu0 0.0
      %1790 = vmatpush1.msra.mxu0 0.0
      %1791 = vmatprep.subr.mxu0 0.0
      %1792 = vmatpush1.msra.mxu0 0.0
      %1793 = vmatprep.subr.mxu0 0.0
      %1794 = vmatpush1.msra.mxu0 0.0
      %1795 = vmatprep.subr.mxu0 0.0
      %1796 = vmatpush1.msra.mxu0 0.0
      %1797 = vmatprep.subr.mxu0 0.0
      %1798 = vmatpush1.msra.mxu0 0.0
      %1799 = vmatprep.subr.mxu0 0.0
      %1800 = vmatpush1.msra.mxu0 0.0
      %1801 = vmatprep.subr.mxu0 0.0
      %1802 = vmatpush1.msra.mxu0 0.0
      %1803 = vmatprep.subr.mxu0 0.0
      %1804 = vmatpush1.msra.mxu0 0.0
      %1805 = vmatprep.subr.mxu0 0.0
      %1806 = vmatpush1.msra.mxu0 0.0
      %1807 = vmatprep.subr.mxu0 0.0
      %1808 = vmatpush1.msra.mxu0 0.0
      %1809 = vmatprep.subr.mxu0 0.0
      %1810 = vmatpush1.msra.mxu0 0.0
      %1811 = vmatprep.subr.mxu0 0.0
      %1812 = vmatpush1.msra.mxu0 0.0
      %1813 = vmatprep.subr.mxu0 0.0
      %1814 = vmatpush1.msra.mxu0 0.0
      %1815 = vmatprep.subr.mxu0 0.0
      %1816 = vmatpush1.msra.mxu0 0.0
      %1817 = vmatprep.subr.mxu0 0.0
      %1818 = vmatpush1.msra.mxu0 0.0
      %1819 = vmatprep.subr.mxu0 0.0
      %1820 = vmatpush1.msra.mxu0 0.0
      %1821 = vmatprep.subr.mxu0 0.0
      %1822 = vmatpush1.msra.mxu0 0.0
      %1823 = vmatprep.subr.mxu0 0.0
      %1824 = vmatpush1.msra.mxu0 0.0
      %1825 = vmatprep.subr.mxu0 0.0
      %1826 = vmatpush1.msra.mxu0 0.0
      %1827 = vmatprep.subr.mxu0 0.0
      %1828 = vmatpush1.msra.mxu0 0.0
      %1829 = vmatprep.subr.mxu0 0.0
      %1830 = vmatpush1.msra.mxu0 0.0
      %1831 = vmatprep.subr.mxu0 0.0
      %1832 = vmatpush1.msra.mxu0 0.0
      %1833 = vmatprep.subr.mxu0 0.0
      %1834 = vmatpush1.msra.mxu0 0.0
      %1835 = vmatprep.mubr.f32.mxu0 0.0
      %1836 = vmatmul.mubr.f32.gmra.mrb[0].mxu0 %v1769
      %v1837 = vpop.f32.mrb[0].mxu0
      %v1838 = vadd.f32 0.0, %v1837
      %v1839 = vpop.f32.mrb[0].mxu0
      %1840 = vdwg.mxu0
      %v1842 = vsel %vm453, %v232, 0
      %1844 = vmatprep.subr.mxu0 0.0
      %1845 = vmatpush1.msra.mxu0 %v389
      %1846 = vmatprep.subr.mxu0 0.0
      %1847 = vmatpush1.msra.mxu0 %v390
      %1848 = vmatprep.subr.mxu0 0.0
      %1849 = vmatpush1.msra.mxu0 %v391
      %1850 = vmatprep.subr.mxu0 0.0
      %1851 = vmatpush1.msra.mxu0 %v392
      %1852 = vmatprep.subr.mxu0 0.0
      %1853 = vmatpush1.msra.mxu0 %v393
      %1854 = vmatprep.subr.mxu0 0.0
      %1855 = vmatpush1.msra.mxu0 %v394
      %1856 = vmatprep.subr.mxu0 0.0
      %1857 = vmatpush1.msra.mxu0 %v395
      %1858 = vmatprep.subr.mxu0 0.0
      %1859 = vmatpush1.msra.mxu0 %v396
      %1860 = vmatprep.subr.mxu0 0.0
      %1861 = vmatpush1.msra.mxu0 0.0
      %1862 = vmatprep.subr.mxu0 0.0
      %1863 = vmatpush1.msra.mxu0 0.0
      %1864 = vmatprep.subr.mxu0 0.0
      %1865 = vmatpush1.msra.mxu0 0.0
      %1866 = vmatprep.subr.mxu0 0.0
      %1867 = vmatpush1.msra.mxu0 0.0
      %1868 = vmatprep.subr.mxu0 0.0
      %1869 = vmatpush1.msra.mxu0 0.0
      %1870 = vmatprep.subr.mxu0 0.0
      %1871 = vmatpush1.msra.mxu0 0.0
      %1872 = vmatprep.subr.mxu0 0.0
      %1873 = vmatpush1.msra.mxu0 0.0
      %1874 = vmatprep.subr.mxu0 0.0
      %1875 = vmatpush1.msra.mxu0 0.0
      %1876 = vmatprep.subr.mxu0 0.0
      %1877 = vmatpush1.msra.mxu0 0.0
      %1878 = vmatprep.subr.mxu0 0.0
      %1879 = vmatpush1.msra.mxu0 0.0
      %1880 = vmatprep.subr.mxu0 0.0
      %1881 = vmatpush1.msra.mxu0 0.0
      %1882 = vmatprep.subr.mxu0 0.0
      %1883 = vmatpush1.msra.mxu0 0.0
      %1884 = vmatprep.subr.mxu0 0.0
      %1885 = vmatpush1.msra.mxu0 0.0
      %1886 = vmatprep.subr.mxu0 0.0
      %1887 = vmatpush1.msra.mxu0 0.0
      %1888 = vmatprep.subr.mxu0 0.0
      %1889 = vmatpush1.msra.mxu0 0.0
      %1890 = vmatprep.subr.mxu0 0.0
      %1891 = vmatpush1.msra.mxu0 0.0
      %1892 = vmatprep.subr.mxu0 0.0
      %1893 = vmatpush1.msra.mxu0 0.0
      %1894 = vmatprep.subr.mxu0 0.0
      %1895 = vmatpush1.msra.mxu0 0.0
      %1896 = vmatprep.subr.mxu0 0.0
      %1897 = vmatpush1.msra.mxu0 0.0
      %1898 = vmatprep.subr.mxu0 0.0
      %1899 = vmatpush1.msra.mxu0 0.0
      %1900 = vmatprep.subr.mxu0 0.0
      %1901 = vmatpush1.msra.mxu0 0.0
      %1902 = vmatprep.subr.mxu0 0.0
      %1903 = vmatpush1.msra.mxu0 0.0
      %1904 = vmatprep.subr.mxu0 0.0
      %1905 = vmatpush1.msra.mxu0 0.0
      %1906 = vmatprep.subr.mxu0 0.0
      %1907 = vmatpush1.msra.mxu0 0.0
      %1908 = vmatprep.mubr.f32.mxu0 0.0
      %1909 = vmatmul.mubr.f32.gmra.mrb[0].mxu0 %v1842
      %v1910 = vpop.f32.mrb[0].mxu0
      %v1911 = vadd.f32 0.0, %v1910
      %v1912 = vpop.f32.mrb[0].mxu0
      %1913 = vdwg.mxu0
      %v1915 = vsel %vm453, %v233, 0
      %1917 = vmatprep.subr.mxu0 0.0
      %1918 = vmatpush1.msra.mxu0 %v397
      %1919 = vmatprep.subr.mxu0 0.0
      %1920 = vmatpush1.msra.mxu0 %v398
      %1921 = vmatprep.subr.mxu0 0.0
      %1922 = vmatpush1.msra.mxu0 %v399
      %1923 = vmatprep.subr.mxu0 0.0
      %1924 = vmatpush1.msra.mxu0 %v400
      %1925 = vmatprep.subr.mxu0 0.0
      %1926 = vmatpush1.msra.mxu0 %v401
      %1927 = vmatprep.subr.mxu0 0.0
      %1928 = vmatpush1.msra.mxu0 %v402
      %1929 = vmatprep.subr.mxu0 0.0
      %1930 = vmatpush1.msra.mxu0 %v403
      %1931 = vmatprep.subr.mxu0 0.0
      %1932 = vmatpush1.msra.mxu0 %v404
      %1933 = vmatprep.subr.mxu0 0.0
      %1934 = vmatpush1.msra.mxu0 0.0
      %1935 = vmatprep.subr.mxu0 0.0
      %1936 = vmatpush1.msra.mxu0 0.0
      %1937 = vmatprep.subr.mxu0 0.0
      %1938 = vmatpush1.msra.mxu0 0.0
      %1939 = vmatprep.subr.mxu0 0.0
      %1940 = vmatpush1.msra.mxu0 0.0
      %1941 = vmatprep.subr.mxu0 0.0
      %1942 = vmatpush1.msra.mxu0 0.0
      %1943 = vmatprep.subr.mxu0 0.0
      %1944 = vmatpush1.msra.mxu0 0.0
      %1945 = vmatprep.subr.mxu0 0.0
      %1946 = vmatpush1.msra.mxu0 0.0
      %1947 = vmatprep.subr.mxu0 0.0
      %1948 = vmatpush1.msra.mxu0 0.0
      %1949 = vmatprep.subr.mxu0 0.0
      %1950 = vmatpush1.msra.mxu0 0.0
      %1951 = vmatprep.subr.mxu0 0.0
      %1952 = vmatpush1.msra.mxu0 0.0
      %1953 = vmatprep.subr.mxu0 0.0
      %1954 = vmatpush1.msra.mxu0 0.0
      %1955 = vmatprep.subr.mxu0 0.0
      %1956 = vmatpush1.msra.mxu0 0.0
      %1957 = vmatprep.subr.mxu0 0.0
      %1958 = vmatpush1.msra.mxu0 0.0
      %1959 = vmatprep.subr.mxu0 0.0
      %1960 = vmatpush1.msra.mxu0 0.0
      %1961 = vmatprep.subr.mxu0 0.0
      %1962 = vmatpush1.msra.mxu0 0.0
      %1963 = vmatprep.subr.mxu0 0.0
      %1964 = vmatpush1.msra.mxu0 0.0
      %1965 = vmatprep.subr.mxu0 0.0
      %1966 = vmatpush1.msra.mxu0 0.0
      %1967 = vmatprep.subr.mxu0 0.0
      %1968 = vmatpush1.msra.mxu0 0.0
      %1969 = vmatprep.subr.mxu0 0.0
      %1970 = vmatpush1.msra.mxu0 0.0
      %1971 = vmatprep.subr.mxu0 0.0
      %1972 = vmatpush1.msra.mxu0 0.0
      %1973 = vmatprep.subr.mxu0 0.0
      %1974 = vmatpush1.msra.mxu0 0.0
      %1975 = vmatprep.subr.mxu0 0.0
      %1976 = vmatpush1.msra.mxu0 0.0
      %1977 = vmatprep.subr.mxu0 0.0
      %1978 = vmatpush1.msra.mxu0 0.0
      %1979 = vmatprep.subr.mxu0 0.0
      %1980 = vmatpush1.msra.mxu0 0.0
      %1981 = vmatprep.mubr.f32.mxu0 0.0
      %1982 = vmatmul.mubr.f32.gmra.mrb[0].mxu0 %v1915
      %v1983 = vpop.f32.mrb[0].mxu0
      %v1984 = vadd.f32 0.0, %v1983
      %v1985 = vpop.f32.mrb[0].mxu0
      %1986 = vdwg.mxu0
      %v1988 = vsel %vm453, %v234, 0
      %1990 = vmatprep.subr.mxu0 0.0
      %1991 = vmatpush1.msra.mxu0 %v405
      %1992 = vmatprep.subr.mxu0 0.0
      %1993 = vmatpush1.msra.mxu0 %v406
      %1994 = vmatprep.subr.mxu0 0.0
      %1995 = vmatpush1.msra.mxu0 %v407
      %1996 = vmatprep.subr.mxu0 0.0
      %1997 = vmatpush1.msra.mxu0 %v408
      %1998 = vmatprep.subr.mxu0 0.0
      %1999 = vmatpush1.msra.mxu0 %v409
      %2000 = vmatprep.subr.mxu0 0.0
      %2001 = vmatpush1.msra.mxu0 %v410
      %2002 = vmatprep.subr.mxu0 0.0
      %2003 = vmatpush1.msra.mxu0 %v411
      %2004 = vmatprep.subr.mxu0 0.0
      %2005 = vmatpush1.msra.mxu0 %v412
      %2006 = vmatprep.subr.mxu0 0.0
      %2007 = vmatpush1.msra.mxu0 0.0
      %2008 = vmatprep.subr.mxu0 0.0
      %2009 = vmatpush1.msra.mxu0 0.0
      %2010 = vmatprep.subr.mxu0 0.0
      %2011 = vmatpush1.msra.mxu0 0.0
      %2012 = vmatprep.subr.mxu0 0.0
      %2013 = vmatpush1.msra.mxu0 0.0
      %2014 = vmatprep.subr.mxu0 0.0
      %2015 = vmatpush1.msra.mxu0 0.0
      %2016 = vmatprep.subr.mxu0 0.0
      %2017 = vmatpush1.msra.mxu0 0.0
      %2018 = vmatprep.subr.mxu0 0.0
      %2019 = vmatpush1.msra.mxu0 0.0
      %2020 = vmatprep.subr.mxu0 0.0
      %2021 = vmatpush1.msra.mxu0 0.0
      %2022 = vmatprep.subr.mxu0 0.0
      %2023 = vmatpush1.msra.mxu0 0.0
      %2024 = vmatprep.subr.mxu0 0.0
      %2025 = vmatpush1.msra.mxu0 0.0
      %2026 = vmatprep.subr.mxu0 0.0
      %2027 = vmatpush1.msra.mxu0 0.0
      %2028 = vmatprep.subr.mxu0 0.0
      %2029 = vmatpush1.msra.mxu0 0.0
      %2030 = vmatprep.subr.mxu0 0.0
      %2031 = vmatpush1.msra.mxu0 0.0
      %2032 = vmatprep.subr.mxu0 0.0
      %2033 = vmatpush1.msra.mxu0 0.0
      %2034 = vmatprep.subr.mxu0 0.0
      %2035 = vmatpush1.msra.mxu0 0.0
      %2036 = vmatprep.subr.mxu0 0.0
      %2037 = vmatpush1.msra.mxu0 0.0
      %2038 = vmatprep.subr.mxu0 0.0
      %2039 = vmatpush1.msra.mxu0 0.0
      %2040 = vmatprep.subr.mxu0 0.0
      %2041 = vmatpush1.msra.mxu0 0.0
      %2042 = vmatprep.subr.mxu0 0.0
      %2043 = vmatpush1.msra.mxu0 0.0
      %2044 = vmatprep.subr.mxu0 0.0
      %2045 = vmatpush1.msra.mxu0 0.0
      %2046 = vmatprep.subr.mxu0 0.0
      %2047 = vmatpush1.msra.mxu0 0.0
      %2048 = vmatprep.subr.mxu0 0.0
      %2049 = vmatpush1.msra.mxu0 0.0
      %2050 = vmatprep.subr.mxu0 0.0
      %2051 = vmatpush1.msra.mxu0 0.0
      %2052 = vmatprep.subr.mxu0 0.0
      %2053 = vmatpush1.msra.mxu0 0.0
      %2054 = vmatprep.mubr.f32.mxu0 0.0
      %2055 = vmatmul.mubr.f32.gmra.mrb[0].mxu0 %v1988
      %v2056 = vpop.f32.mrb[0].mxu0
      %v2057 = vadd.f32 0.0, %v2056
      %v2058 = vpop.f32.mrb[0].mxu0
      %2059 = vdwg.mxu0
      %v2061 = vsel %vm453, %v235, 0
      %2063 = vmatprep.subr.mxu0 0.0
      %2064 = vmatpush1.msra.mxu0 %v413
      %2065 = vmatprep.subr.mxu0 0.0
      %2066 = vmatpush1.msra.mxu0 %v414
      %2067 = vmatprep.subr.mxu0 0.0
      %2068 = vmatpush1.msra.mxu0 %v415
      %2069 = vmatprep.subr.mxu0 0.0
      %2070 = vmatpush1.msra.mxu0 %v416
      %2071 = vmatprep.subr.mxu0 0.0
      %2072 = vmatpush1.msra.mxu0 %v417
      %2073 = vmatprep.subr.mxu0 0.0
      %2074 = vmatpush1.msra.mxu0 %v418
      %2075 = vmatprep.subr.mxu0 0.0
      %2076 = vmatpush1.msra.mxu0 %v419
      %2077 = vmatprep.subr.mxu0 0.0
      %2078 = vmatpush1.msra.mxu0 %v420
      %2079 = vmatprep.subr.mxu0 0.0
      %2080 = vmatpush1.msra.mxu0 0.0
      %2081 = vmatprep.subr.mxu0 0.0
      %2082 = vmatpush1.msra.mxu0 0.0
      %2083 = vmatprep.subr.mxu0 0.0
      %2084 = vmatpush1.msra.mxu0 0.0
      %2085 = vmatprep.subr.mxu0 0.0
      %2086 = vmatpush1.msra.mxu0 0.0
      %2087 = vmatprep.subr.mxu0 0.0
      %2088 = vmatpush1.msra.mxu0 0.0
      %2089 = vmatprep.subr.mxu0 0.0
      %2090 = vmatpush1.msra.mxu0 0.0
      %2091 = vmatprep.subr.mxu0 0.0
      %2092 = vmatpush1.msra.mxu0 0.0
      %2093 = vmatprep.subr.mxu0 0.0
      %2094 = vmatpush1.msra.mxu0 0.0
      %2095 = vmatprep.subr.mxu0 0.0
      %2096 = vmatpush1.msra.mxu0 0.0
      %2097 = vmatprep.subr.mxu0 0.0
      %2098 = vmatpush1.msra.mxu0 0.0
      %2099 = vmatprep.subr.mxu0 0.0
      %2100 = vmatpush1.msra.mxu0 0.0
      %2101 = vmatprep.subr.mxu0 0.0
      %2102 = vmatpush1.msra.mxu0 0.0
      %2103 = vmatprep.subr.mxu0 0.0
      %2104 = vmatpush1.msra.mxu0 0.0
      %2105 = vmatprep.subr.mxu0 0.0
      %2106 = vmatpush1.msra.mxu0 0.0
      %2107 = vmatprep.subr.mxu0 0.0
      %2108 = vmatpush1.msra.mxu0 0.0
      %2109 = vmatprep.subr.mxu0 0.0
      %2110 = vmatpush1.msra.mxu0 0.0
      %2111 = vmatprep.subr.mxu0 0.0
      %2112 = vmatpush1.msra.mxu0 0.0
      %2113 = vmatprep.subr.mxu0 0.0
      %2114 = vmatpush1.msra.mxu0 0.0
      %2115 = vmatprep.subr.mxu0 0.0
      %2116 = vmatpush1.msra.mxu0 0.0
      %2117 = vmatprep.subr.mxu0 0.0
      %2118 = vmatpush1.msra.mxu0 0.0
      %2119 = vmatprep.subr.mxu0 0.0
      %2120 = vmatpush1.msra.mxu0 0.0
      %2121 = vmatprep.subr.mxu0 0.0
      %2122 = vmatpush1.msra.mxu0 0.0
      %2123 = vmatprep.subr.mxu0 0.0
      %2124 = vmatpush1.msra.mxu0 0.0
      %2125 = vmatprep.subr.mxu0 0.0
      %2126 = vmatpush1.msra.mxu0 0.0
      %2127 = vmatprep.mubr.f32.mxu0 0.0
      %2128 = vmatmul.mubr.f32.gmra.mrb[0].mxu0 %v2061
      %v2129 = vpop.f32.mrb[0].mxu0
      %v2130 = vadd.f32 0.0, %v2129
      %v2131 = vpop.f32.mrb[0].mxu0
      %2132 = vdwg.mxu0
      %v2134 = vsel %vm453, %v236, 0
      %2136 = vmatprep.subr.mxu0 0.0
      %2137 = vmatpush1.msra.mxu0 %v421
      %2138 = vmatprep.subr.mxu0 0.0
      %2139 = vmatpush1.msra.mxu0 %v422
      %2140 = vmatprep.subr.mxu0 0.0
      %2141 = vmatpush1.msra.mxu0 %v423
      %2142 = vmatprep.subr.mxu0 0.0
      %2143 = vmatpush1.msra.mxu0 %v424
      %2144 = vmatprep.subr.mxu0 0.0
      %2145 = vmatpush1.msra.mxu0 %v425
      %2146 = vmatprep.subr.mxu0 0.0
      %2147 = vmatpush1.msra.mxu0 %v426
      %2148 = vmatprep.subr.mxu0 0.0
      %2149 = vmatpush1.msra.mxu0 %v427
      %2150 = vmatprep.subr.mxu0 0.0
      %2151 = vmatpush1.msra.mxu0 %v428
      %2152 = vmatprep.subr.mxu0 0.0
      %2153 = vmatpush1.msra.mxu0 0.0
      %2154 = vmatprep.subr.mxu0 0.0
      %2155 = vmatpush1.msra.mxu0 0.0
      %2156 = vmatprep.subr.mxu0 0.0
      %2157 = vmatpush1.msra.mxu0 0.0
      %2158 = vmatprep.subr.mxu0 0.0
      %2159 = vmatpush1.msra.mxu0 0.0
      %2160 = vmatprep.subr.mxu0 0.0
      %2161 = vmatpush1.msra.mxu0 0.0
      %2162 = vmatprep.subr.mxu0 0.0
      %2163 = vmatpush1.msra.mxu0 0.0
      %2164 = vmatprep.subr.mxu0 0.0
      %2165 = vmatpush1.msra.mxu0 0.0
      %2166 = vmatprep.subr.mxu0 0.0
      %2167 = vmatpush1.msra.mxu0 0.0
      %2168 = vmatprep.subr.mxu0 0.0
      %2169 = vmatpush1.msra.mxu0 0.0
      %2170 = vmatprep.subr.mxu0 0.0
      %2171 = vmatpush1.msra.mxu0 0.0
      %2172 = vmatprep.subr.mxu0 0.0
      %2173 = vmatpush1.msra.mxu0 0.0
      %2174 = vmatprep.subr.mxu0 0.0
      %2175 = vmatpush1.msra.mxu0 0.0
      %2176 = vmatprep.subr.mxu0 0.0
      %2177 = vmatpush1.msra.mxu0 0.0
      %2178 = vmatprep.subr.mxu0 0.0
      %2179 = vmatpush1.msra.mxu0 0.0
      %2180 = vmatprep.subr.mxu0 0.0
      %2181 = vmatpush1.msra.mxu0 0.0
      %2182 = vmatprep.subr.mxu0 0.0
      %2183 = vmatpush1.msra.mxu0 0.0
      %2184 = vmatprep.subr.mxu0 0.0
      %2185 = vmatpush1.msra.mxu0 0.0
      %2186 = vmatprep.subr.mxu0 0.0
      %2187 = vmatpush1.msra.mxu0 0.0
      %2188 = vmatprep.subr.mxu0 0.0
      %2189 = vmatpush1.msra.mxu0 0.0
      %2190 = vmatprep.subr.mxu0 0.0
      %2191 = vmatpush1.msra.mxu0 0.0
      %2192 = vmatprep.subr.mxu0 0.0
      %2193 = vmatpush1.msra.mxu0 0.0
      %2194 = vmatprep.subr.mxu0 0.0
      %2195 = vmatpush1.msra.mxu0 0.0
      %2196 = vmatprep.subr.mxu0 0.0
      %2197 = vmatpush1.msra.mxu0 0.0
      %2198 = vmatprep.subr.mxu0 0.0
      %2199 = vmatpush1.msra.mxu0 0.0
      %2200 = vmatprep.mubr.f32.mxu0 0.0
      %2201 = vmatmul.mubr.f32.gmra.mrb[0].mxu0 %v2134
      %v2202 = vpop.f32.mrb[0].mxu0
      %v2203 = vadd.f32 0.0, %v2202
      %v2204 = vpop.f32.mrb[0].mxu0
      %2205 = vdwg.mxu0
      %v2206 = vmul.f32 %v524, %v429
      %v2207 = vmul.f32 %v597, %v430
      %v2208 = vmul.f32 %v670, %v431
      %v2209 = vmul.f32 %v743, %v432
      %v2210 = vmul.f32 %v816, %v433
      %v2211 = vmul.f32 %v889, %v434
      %v2212 = vmul.f32 %v962, %v435
      %v2213 = vmul.f32 %v1035, %v436
      %v2214 = vmul.f32 %v1108, %v437
      %v2215 = vmul.f32 %v1181, %v438
      %v2216 = vmul.f32 %v1254, %v439
      %v2217 = vmul.f32 %v1327, %v440
      %v2218 = vmul.f32 %v1400, %v441
      %v2219 = vmul.f32 %v1473, %v442
      %v2220 = vmul.f32 %v1546, %v443
      %v2221 = vmul.f32 %v1619, %v444
      %v2222 = vmul.f32 %v1692, %v445
      %v2223 = vmul.f32 %v1765, %v446
      %v2224 = vmul.f32 %v1838, %v447
      %v2225 = vmul.f32 %v1911, %v448
      %v2226 = vmul.f32 %v1984, %v449
      %v2227 = vmul.f32 %v2057, %v450
      %v2228 = vmul.f32 %v2130, %v451
      %v2229 = vmul.f32 %v2203, %v452
      %vm2230 = vcmask 516096
      %v2231 = vsel %vm2230, %v2206, 0.0
      %2232 = vadd.xlane.f32.xlu0 %v2231
      %v2233 = vpop.xlane.xlu0 %2232
      %v2234 = vsel %vm2230, %v2207, 0.0
      %2235 = vadd.xlane.f32.xlu0 %v2234
      %v2236 = vpop.xlane.xlu0 %2235
      %v2237 = vsel %vm2230, %v2208, 0.0
      %2238 = vadd.xlane.f32.xlu0 %v2237
      %v2239 = vpop.xlane.xlu0 %2238
      %v2240 = vsel %vm2230, %v2209, 0.0
      %2241 = vadd.xlane.f32.xlu0 %v2240
      %v2242 = vpop.xlane.xlu0 %2241
      %v2243 = vsel %vm2230, %v2210, 0.0
      %2244 = vadd.xlane.f32.xlu0 %v2243
      %v2245 = vpop.xlane.xlu0 %2244
      %v2246 = vsel %vm2230, %v2211, 0.0
      %2247 = vadd.xlane.f32.xlu0 %v2246
      %v2248 = vpop.xlane.xlu0 %2247
      %v2249 = vsel %vm2230, %v2212, 0.0
      %2250 = vadd.xlane.f32.xlu0 %v2249
      %v2251 = vpop.xlane.xlu0 %2250
      %v2252 = vsel %vm2230, %v2213, 0.0
      %2253 = vadd.xlane.f32.xlu0 %v2252
      %v2254 = vpop.xlane.xlu0 %2253
      %v2255 = vsel %vm2230, %v2214, 0.0
      %2256 = vadd.xlane.f32.xlu0 %v2255
      %v2257 = vpop.xlane.xlu0 %2256
      %v2258 = vsel %vm2230, %v2215, 0.0
      %2259 = vadd.xlane.f32.xlu0 %v2258
      %v2260 = vpop.xlane.xlu0 %2259
      %v2261 = vsel %vm2230, %v2216, 0.0
      %2262 = vadd.xlane.f32.xlu0 %v2261
      %v2263 = vpop.xlane.xlu0 %2262
      %v2264 = vsel %vm2230, %v2217, 0.0
      %2265 = vadd.xlane.f32.xlu0 %v2264
      %v2266 = vpop.xlane.xlu0 %2265
      %v2267 = vsel %vm2230, %v2218, 0.0
      %2268 = vadd.xlane.f32.xlu0 %v2267
      %v2269 = vpop.xlane.xlu0 %2268
      %v2270 = vsel %vm2230, %v2219, 0.0
      %2271 = vadd.xlane.f32.xlu0 %v2270
      %v2272 = vpop.xlane.xlu0 %2271
      %v2273 = vsel %vm2230, %v2220, 0.0
      %2274 = vadd.xlane.f32.xlu0 %v2273
      %v2275 = vpop.xlane.xlu0 %2274
      %v2276 = vsel %vm2230, %v2221, 0.0
      %2277 = vadd.xlane.f32.xlu0 %v2276
      %v2278 = vpop.xlane.xlu0 %2277
      %v2279 = vsel %vm2230, %v2222, 0.0
      %2280 = vadd.xlane.f32.xlu0 %v2279
      %v2281 = vpop.xlane.xlu0 %2280
      %v2282 = vsel %vm2230, %v2223, 0.0
      %2283 = vadd.xlane.f32.xlu0 %v2282
      %v2284 = vpop.xlane.xlu0 %2283
      %v2285 = vsel %vm2230, %v2224, 0.0
      %2286 = vadd.xlane.f32.xlu0 %v2285
      %v2287 = vpop.xlane.xlu0 %2286
      %v2288 = vsel %vm2230, %v2225, 0.0
      %2289 = vadd.xlane.f32.xlu0 %v2288
      %v2290 = vpop.xlane.xlu0 %2289
      %v2291 = vsel %vm2230, %v2226, 0.0
      %2292 = vadd.xlane.f32.xlu0 %v2291
      %v2293 = vpop.xlane.xlu0 %2292
      %v2294 = vsel %vm2230, %v2227, 0.0
      %2295 = vadd.xlane.f32.xlu0 %v2294
      %v2296 = vpop.xlane.xlu0 %2295
      %v2297 = vsel %vm2230, %v2228, 0.0
      %2298 = vadd.xlane.f32.xlu0 %v2297
      %v2299 = vpop.xlane.xlu0 %2298
      %v2300 = vsel %vm2230, %v2229, 0.0
      %2301 = vadd.xlane.f32.xlu0 %v2300
      %v2302 = vpop.xlane.xlu0 %2301
      %vm2303 = vcmask 0
      %2304 = vst.msk [vmem:[%s211] sm:$0x1] %vm2303, %v2233
      %2305 = vst.msk [vmem:[%s211 + $0x1] sm:$0x1] %vm2303, %v2236
      %2306 = vst.msk [vmem:[%s211 + $0x2] sm:$0x1] %vm2303, %v2239
      %2307 = vst.msk [vmem:[%s211 + $0x3] sm:$0x1] %vm2303, %v2242
      %2308 = vst.msk [vmem:[%s211 + $0x4] sm:$0x1] %vm2303, %v2245
      %2309 = vst.msk [vmem:[%s211 + $0x5] sm:$0x1] %vm2303, %v2248
      %2310 = vst.msk [vmem:[%s211 + $0x6] sm:$0x1] %vm2303, %v2251
      %2311 = vst.msk [vmem:[%s211 + $0x7] sm:$0x1] %vm2303, %v2254
      %2312 = vst.msk [vmem:[%s211 + $0x8] sm:$0x1] %vm2303, %v2257
      %2313 = vst.msk [vmem:[%s211 + $0x9] sm:$0x1] %vm2303, %v2260
      %2314 = vst.msk [vmem:[%s211 + $0xa] sm:$0x1] %vm2303, %v2263
      %2315 = vst.msk [vmem:[%s211 + $0xb] sm:$0x1] %vm2303, %v2266
      %2316 = vst.msk [vmem:[%s211 + $0xc] sm:$0x1] %vm2303, %v2269
      %2317 = vst.msk [vmem:[%s211 + $0xd] sm:$0x1] %vm2303, %v2272
      %2318 = vst.msk [vmem:[%s211 + $0xe] sm:$0x1] %vm2303, %v2275
      %2319 = vst.msk [vmem:[%s211 + $0xf] sm:$0x1] %vm2303, %v2278
      %2320 = vst.msk [vmem:[%s211 + $0x10] sm:$0x1] %vm2303, %v2281
      %2321 = vst.msk [vmem:[%s211 + $0x11] sm:$0x1] %vm2303, %v2284
      %2322 = vst.msk [vmem:[%s211 + $0x12] sm:$0x1] %vm2303, %v2287
      %2323 = vst.msk [vmem:[%s211 + $0x13] sm:$0x1] %vm2303, %v2290
      %2324 = vst.msk [vmem:[%s211 + $0x14] sm:$0x1] %vm2303, %v2293
      %2325 = vst.msk [vmem:[%s211 + $0x15] sm:$0x1] %vm2303, %v2296
      %2326 = vst.msk [vmem:[%s211 + $0x16] sm:$0x1] %vm2303, %v2299
      %2327 = vst.msk [vmem:[%s211 + $0x17] sm:$0x1] %vm2303, %v2302
      %s2328 = smul.u32 24, %s14
      %p2329 = scmp.lt.s32.totalorder %s2328, 71
      %s2330 = scalar_select %p2329, %s2328, 71
      %s2331 = scalar_lea.vmem %s3, %s2330
      // Predicated region
      $region33: #{tpu_custom_call.1} parent=31 // pred_check
        %p2332 = pneg %p110
      $region34: #{tpu_custom_call.1} parent=31 // pred_check_branch
        %2334 = sbr.rel (%p2332) target = $region36
      $region35: #{tpu_custom_call.1} parent=31 // pred_region
        %s2335 = smul.u32 24, %s14
      $region36: #{tpu_custom_call.1} parent=31 // pred_fallthru
        _
    $region32: #{tpu_custom_call.1} parent=5 // pred_fallthru
      _
    %p2336 = scmp.le.s32.totalorder 2, %s9
    // Predicated region
    $region37: #{tpu_custom_call.1} parent=5 // pred_check
      %p2337 = pneg %p2336
    $region38: #{tpu_custom_call.1} parent=5 // pred_check_branch
      %2339 = sbr.rel (%p2337) target = $region40
    $region39: #{tpu_custom_call.1} parent=5 // pred_region
      %s2340 = ssub.s32 %s9, 2
      // Predicated region
      $region41: #{tpu_custom_call.1} parent=39 // pred_check
        %p2341 = pneg %p116
      $region42: #{tpu_custom_call.1} parent=39 // pred_check_branch
        %2343 = sbr.rel (%p2341) target = $region44
      $region43: #{tpu_custom_call.1} parent=39 // pred_region
        %s2344 = smul.u32 24, %s15
        %p2345 = scmp.lt.s32.totalorder %s2344, 71
        %s2346 = scalar_select %p2345, %s2344, 71
        %s2347 = scalar_lea.vmem %s3, %s2346
      $region44: #{tpu_custom_call.1} parent=39 // pred_fallthru
        _
    $region40: #{tpu_custom_call.1} parent=5 // pred_fallthru
      _
  $region6: #{tpu_custom_call.1} parent=0 // loop_footer
    %s13 = sadd.s32 1, %s9
  $region7: #{tpu_custom_call.1} parent=0 // loop_footer_branch
    %8 = sbr.rel target = $region3
  $region8: #{tpu_custom_call.1} parent=0 // loop_exit
    _

</llo_original>
